<compile_context>
chip_gen: v6e
topology: v6e:2x2x1
jax: 0.10.0
libtpu: 0.0.40
codegen_flags: <defaults>
</compile_context>

<pallas_src>
import functools

import jax
import jax.numpy as jnp
from jax.experimental import pallas as pl
from jax.experimental.pallas import tpu as pltpu


# ---------------------------------------------------------------------------
# Fused Pallas kernel: all temporal blocks, one batch tile per grid step.
# ---------------------------------------------------------------------------
def _tcn_fused_kernel(t_ref, x_ref, *rest, ksize, dilations, has_down,
                      seq_len, accum_min_cin):
    """Fused TCN forward for one batch tile.

    t_ref : (1, N) int32  time index within each sequence (N = bt * L)
    x_ref : (C0p, N)      input activations (compute dtype), time on lanes
    rest  : per-block weight refs (w1_cat, b1, w2_cat, b2[, wd, bd]) ..., out_ref
      w*_cat : (Coutp, K*Cinp)  conv taps concatenated along the contraction axis
      b*     : (Coutp, 1) f32
      wd, bd : 1x1 downsample (only where Cin != Cout)
    """
    *w_refs, o_ref = rest
    t_idx = t_ref[...]                          # (1, N) int32
    h = x_ref[...]                              # (C0p, N) compute dtype
    cdt = h.dtype
    n = h.shape[-1]

    # 0/1 causal masks, one per distinct shift in the whole network, computed
    # once and reused by conv1/conv2 of every block (same dilation => same shifts).
    shift_set = sorted({(ksize - 1 - j) * d
                        for d in dilations for j in range(ksize)
                        if 0 < (ksize - 1 - j) * d < seq_len})
    one, zero = jnp.ones((), cdt), jnp.zeros((), cdt)
    masks = {s: jnp.where(t_idx >= s, one, zero) for s in shift_set}

    def causal_taps(a, dilation):
        # tap j reads a[:, t - (K-1-j)*dilation]; positions whose source index
        # falls before the sequence start are zeroed.  pltpu.roll runs on the
        # XLU slot -- no padded copies, no unaligned slice copies.
        taps = []
        for j in range(ksize):
            s = (ksize - 1 - j) * dilation
            if s == 0:
                taps.append(a)
            elif s >= seq_len:
                taps.append(None)               # entirely pre-sequence: contributes 0
            else:
                taps.append(pltpu.roll(a, s, 1) * masks[s])
        return taps

    def dilated_conv(a, w_ref, b_ref, dilation):
        cin = a.shape[0]
        taps = causal_taps(a, dilation)
        if cin < accum_min_cin:
            # Small contraction: one wide MXU matmul (Cout, K*Cin) x (K*Cin, N).
            cat = jnp.concatenate(
                [t if t is not None else jnp.zeros_like(a) for t in taps], axis=0)
            y = jnp.dot(w_ref[...], cat, preferred_element_type=jnp.float32)
        else:
            # Wide channels: accumulate K tap-matmuls; avoids materializing the
            # K*Cin x N concat slab (cuts peak activation VMEM by ~K).
            w = w_ref[...]
            y = None
            for j, t in enumerate(taps):
                if t is None:
                    continue
                part = jnp.dot(w[:, j * cin:(j + 1) * cin], t,
                               preferred_element_type=jnp.float32)
                y = part if y is None else y + part
            if y is None:
                y = jnp.zeros((w_ref.shape[0], n), jnp.float32)
        return y + b_ref[...]                   # bias (Cout, 1) f32, lane-broadcast

    widx = 0
    for li, d in enumerate(dilations):
        w1, b1, w2, b2 = w_refs[widx:widx + 4]
        widx += 4
        # conv1 -> chomp -> relu -> dropout(identity); resident act in compute dtype
        z = jnp.maximum(dilated_conv(h, w1, b1, d), 0.0).astype(cdt)
        # conv2 -> chomp -> relu -> dropout(identity)  (kept f32 for the residual add)
        z2 = jnp.maximum(dilated_conv(z, w2, b2, d), 0.0)
        if has_down[li]:
            wd, bd = w_refs[widx:widx + 2]
            widx += 2
            res = jnp.dot(wd[...], h, preferred_element_type=jnp.float32) + bd[...]
        else:
            res = h                              # promoted to f32 in the add
        h = jnp.maximum(z2 + res, 0.0).astype(cdt)
    o_ref[...] = h.astype(o_ref.dtype)


# ---------------------------------------------------------------------------
# Wrapper helpers
# ---------------------------------------------------------------------------
def _pad_to(n, m):
    return ((n + m - 1) // m) * m


def _vmem_capacity_bytes():
    try:
        return int(pltpu.get_tpu_info().vmem_capacity_bytes)
    except Exception:
        return 128 * 1024 * 1024


def _choose_batch_tile(batch, seq_len, per_lane_bytes, tile_budget_bytes):
    """Largest divisor of `batch` whose lane width is 128-aligned and whose
    working set fits the VMEM tile budget; prefer grid >= 2 (v7x: 2 TCs)."""
    divs = [d for d in range(1, batch + 1) if batch % d == 0]
    aligned = [d for d in divs if (d * seq_len) % 128 == 0]
    if not aligned:                 # full-extent lane block is always legal
        return batch
    fits = [d for d in aligned if d * seq_len * per_lane_bytes <= tile_budget_bytes]
    if not fits:
        fits = [min(aligned)]
    multi = [d for d in fits if batch // d >= 2]
    return max(multi) if multi else max(fits)


# ---------------------------------------------------------------------------
# Wrapper
# ---------------------------------------------------------------------------
def tcn_forward(x_bcl, params, kernel_size, *, compute_dtype=jnp.float32,
                out_dtype=jnp.float32, batch_tile=None, accum_min_cin=128):
    """TemporalConvNet forward (eval semantics). I/O in PyTorch (B, C, L) layout."""
    B, c_in, L = x_bcl.shape
    blocks = params["blocks"]
    cd_b = jnp.dtype(compute_dtype).itemsize
    out_b = jnp.dtype(out_dtype).itemsize
    sub = 16 if cd_b == 2 else 8            # sublane multiple for the stored dtype
    full = lambda i: (0, 0)

    # ---- fold weights into MXU-friendly layout, pad channels to sublane ----
    dilations, has_down = [], []
    w_inputs, w_specs = [], []
    ch, ch_p = c_in, _pad_to(c_in, sub)
    cin0_p = ch_p
    for li, (w1, b1, w2, b2, wd, bd) in enumerate(blocks):
        out_ch, in_ch, k = w1.shape
        assert in_ch == ch and k == kernel_size
        out_p = _pad_to(out_ch, sub)
        dilations.append(2 ** li)

        def to_cat(w, cin, cin_p, cout, cout_p):
            # column j*cin_p + c  <-  w[o, c, j]  (taps along the contraction axis)
            wp = jnp.zeros((cout_p, cin_p, k), jnp.float32).at[:cout, :cin, :].set(w)
            return jnp.transpose(wp, (0, 2, 1)).reshape(cout_p, k * cin_p)

        def pad_bias(b, cout, cout_p):
            return jnp.zeros((cout_p, 1), jnp.float32).at[:cout, 0].set(b)

        w1c = to_cat(w1, in_ch, ch_p, out_ch, out_p).astype(compute_dtype)
        w2c = to_cat(w2, out_ch, out_p, out_ch, out_p).astype(compute_dtype)
        b1p, b2p = pad_bias(b1, out_ch, out_p), pad_bias(b2, out_ch, out_p)
        # TODO(synk): pipeline_mode=pl.Buffered(1) on these constant-index weight
        # blocks would halve their VMEM reservation once confirmed supported.
        w_inputs += [w1c, b1p, w2c, b2p]
        w_specs += [pl.BlockSpec(w1c.shape, full), pl.BlockSpec(b1p.shape, full),
                    pl.BlockSpec(w2c.shape, full), pl.BlockSpec(b2p.shape, full)]
        if wd is not None:
            wdp = (jnp.zeros((out_p, ch_p), jnp.float32)
                   .at[:out_ch, :in_ch].set(wd).astype(compute_dtype))
            bdp = pad_bias(bd, out_ch, out_p)
            w_inputs += [wdp, bdp]
            w_specs += [pl.BlockSpec(wdp.shape, full), pl.BlockSpec(bdp.shape, full)]
            has_down.append(True)
        else:
            has_down.append(False)
        ch, ch_p = out_ch, out_p
    c_out, c_out_p = ch, ch_p

    # ---- input slab: (B, C, L) -> (Cp, B*L), time on the lane axis (glue) ----
    x_slab = jnp.transpose(x_bcl.astype(jnp.float32), (1, 0, 2)).reshape(c_in, B * L)
    if cin0_p > c_in:
        x_slab = jnp.concatenate(
            [x_slab, jnp.zeros((cin0_p - c_in, B * L), jnp.float32)], axis=0)
    x_slab = x_slab.astype(compute_dtype)

    # ---- generation-aware VMEM budget and batch-tile choice ----
    vmem_cap = _vmem_capacity_bytes()
    budget = (48 << 20) if vmem_cap <= (64 << 20) else (100 << 20)
    w_bytes = sum(int(a.size) * a.dtype.itemsize for a in w_inputs)

    act_per_lane, ci = 0, cin0_p
    for blk in blocks:
        co = _pad_to(blk[0].shape[0], sub)
        taps_live = kernel_size if max(ci, co) < accum_min_cin else 2
        per = (taps_live * max(ci, co) * cd_b      # rolled taps / concat slab
               + cd_b * (ci + co)                  # h, z
               + 4 * 2 * co)                       # f32 accumulator + residual
        act_per_lane = max(act_per_lane, per)
        ci = co
    io_per_lane = 2 * (cin0_p * cd_b + c_out_p * out_b) + 2 * 4
    per_lane = io_per_lane + int(1.5 * act_per_lane)
    tile_budget = max(budget - 2 * w_bytes, 2 << 20)

    bt = _choose_batch_tile(B, L, per_lane, tile_budget) if batch_tile is None \
        else batch_tile
    assert B % bt == 0
    n_tile = bt * L
    footprint = 2 * w_bytes + per_lane * n_tile
    vmem_limit = int(min(budget, max(32 << 20, int(1.5 * footprint))))
    # TODO(synk): for very long sequences / wide channels add a time-chunk grid
    # axis with a receptive-field halo so n_tile is not forced to be bt*L.

    t_idx = jnp.tile(jnp.arange(L, dtype=jnp.int32), bt)[None, :]   # (1, n_tile)

    kernel = functools.partial(
        _tcn_fused_kernel, ksize=kernel_size, dilations=tuple(dilations),
        has_down=tuple(has_down), seq_len=L, accum_min_cin=accum_min_cin)

    out_slab = pl.pallas_call(
        kernel,
        out_shape=jax.ShapeDtypeStruct((c_out_p, B * L), out_dtype),
        grid=(B // bt,),
        in_specs=[pl.BlockSpec((1, n_tile), full),
                  pl.BlockSpec((cin0_p, n_tile), lambda i: (0, i))] + w_specs,
        out_specs=pl.BlockSpec((c_out_p, n_tile), lambda i: (0, i)),
        compiler_params=pltpu.CompilerParams(
            dimension_semantics=("parallel",),
            vmem_limit_bytes=vmem_limit),
    )(t_idx, x_slab, *w_inputs)

    out_slab = out_slab[:c_out]                                  # drop channel pad
    return jnp.transpose(out_slab.reshape(c_out, B, L), (1, 0, 2))   # (B, C, L)
# TODO(synk): nn.Dropout is identity here (eval semantics); training-mode RNG
# dropout is not implemented.


# ---------------------------------------------------------------------------
# Parameter init (deterministic, synthetic). Weights kept in PyTorch layout
# (Cout, Cin, K); weight_norm is folded into effective weights here (glue).
# ---------------------------------------------------------------------------
def _weight_norm_effective(v, g):
    norm = jnp.sqrt(jnp.sum(v * v, axis=(1, 2), keepdims=True))
    return g[:, None, None] * v / norm


def init_tcn_params(key, num_inputs, num_channels, kernel_size):
    blocks = []
    keys = iter(jax.random.split(key, 8 * len(num_channels)))
    in_ch = num_inputs
    for out_ch in num_channels:
        v1 = 0.01 * jax.random.normal(next(keys), (out_ch, in_ch, kernel_size), jnp.float32)
        g1 = 1.0 + 0.1 * jax.random.normal(next(keys), (out_ch,), jnp.float32)
        b1 = 0.05 * jax.random.normal(next(keys), (out_ch,), jnp.float32)
        v2 = 0.01 * jax.random.normal(next(keys), (out_ch, out_ch, kernel_size), jnp.float32)
        g2 = 1.0 + 0.1 * jax.random.normal(next(keys), (out_ch,), jnp.float32)
        b2 = 0.05 * jax.random.normal(next(keys), (out_ch,), jnp.float32)
        if in_ch != out_ch:     # downsample exists iff channel count changes
            wd = 0.01 * jax.random.normal(next(keys), (out_ch, in_ch), jnp.float32)
            bd = 0.05 * jax.random.normal(next(keys), (out_ch,), jnp.float32)
        else:
            wd, bd = None, None
            next(keys); next(keys)
        blocks.append((_weight_norm_effective(v1, g1), b1,
                       _weight_norm_effective(v2, g2), b2, wd, bd))
        in_ch = out_ch
    return {"blocks": blocks}


# ---------------------------------------------------------------------------
# Pure-JAX reference (correctness check only)
# ---------------------------------------------------------------------------
def _ref_conv1d(x, w, b, dilation, padding):
    dn = jax.lax.conv_dimension_numbers(x.shape, w.shape, ("NCH", "OIH", "NCH"))
    y = jax.lax.conv_general_dilated(
        x, w, (1,), [(padding, padding)], rhs_dilation=(dilation,),
        dimension_numbers=dn, precision=jax.lax.Precision.HIGHEST)
    return y + b[None, :, None]


def ref_tcn_forward(x_bcl, params, kernel_size):
    x = x_bcl.astype(jnp.float32)
    for i, (w1, b1, w2, b2, wd, bd) in enumerate(params["blocks"]):
        d = 2 ** i
        pad = (kernel_size - 1) * d
        out = _ref_conv1d(x, w1, b1, d, pad)
        if pad > 0:
            out = out[:, :, :-pad]
        out = jax.nn.relu(out)
        out = _ref_conv1d(out, w2, b2, d, pad)
        if pad > 0:
            out = out[:, :, :-pad]
        out = jax.nn.relu(out)
        res = x if wd is None else _ref_conv1d(x, wd[:, :, None], bd, 1, 0)
        x = jax.nn.relu(out + res)
    return x


# ---------------------------------------------------------------------------
if __name__ == "__main__":
    key = jax.random.PRNGKey(0)
    k_params, k_x = jax.random.split(key)

    # Small but representative: odd channel counts exercise the sublane padding,
    # 3 levels exercise dilations 1/2/4, identity and downsample residuals.
    B, num_inputs, L = 2, 5, 128
    num_channels = (12, 12, 20)
    kernel_size = 3

    params = init_tcn_params(k_params, num_inputs, num_channels, kernel_size)
    x = jax.random.normal(k_x, (B, num_inputs, L), jnp.float32)

    ref = ref_tcn_forward(x, params, kernel_size)

    def check(out, tag, mean_tol, max_tol):
        assert out.shape == ref.shape, (tag, out.shape)
        diff = jnp.abs(out.astype(jnp.float32) - ref)
        mean_err, max_err = float(jnp.mean(diff)), float(jnp.max(diff))
        assert mean_err < mean_tol and max_err < max_tol, (tag, mean_err, max_err)

    # f32, wide-contraction (concat) path.
    out = jax.block_until_ready(tcn_forward(x, params, kernel_size))
    check(out, "f32/concat", 2e-3, 3e-2)

    # f32, per-tap accumulation path (forced) -- same semantics, less VMEM.
    out_acc = jax.block_until_ready(
        tcn_forward(x, params, kernel_size, accum_min_cin=1))
    check(out_acc, "f32/per-tap", 2e-3, 3e-2)

    # bf16 MXU operands / bf16-resident activations, f32 accumulation, bf16 out.
    out_bf16 = jax.block_until_ready(
        tcn_forward(x, params, kernel_size,
                    compute_dtype=jnp.bfloat16, out_dtype=jnp.bfloat16))
    assert bool(jnp.all(jnp.isfinite(out_bf16.astype(jnp.float32))))
    check(out_bf16, "bf16", 3e-2, 0.3)

    print("KERNEL_OK")
</pallas_src>

<mosaic_0001>
module attributes {stable_mosaic.version = 11 : i64} {
  func.func @_tcn_fused_kernel(%arg0: i32, %arg1: memref<1x128xi32, #tpu.memory_space<vmem>>, %arg2: memref<8x128xf32, #tpu.memory_space<vmem>>, %arg3: memref<16x24xf32, #tpu.memory_space<vmem>>, %arg4: memref<16x1xf32, #tpu.memory_space<vmem>>, %arg5: memref<16x48xf32, #tpu.memory_space<vmem>>, %arg6: memref<16x1xf32, #tpu.memory_space<vmem>>, %arg7: memref<16x8xf32, #tpu.memory_space<vmem>>, %arg8: memref<16x1xf32, #tpu.memory_space<vmem>>, %arg9: memref<16x48xf32, #tpu.memory_space<vmem>>, %arg10: memref<16x1xf32, #tpu.memory_space<vmem>>, %arg11: memref<16x48xf32, #tpu.memory_space<vmem>>, %arg12: memref<16x1xf32, #tpu.memory_space<vmem>>, %arg13: memref<24x48xf32, #tpu.memory_space<vmem>>, %arg14: memref<24x1xf32, #tpu.memory_space<vmem>>, %arg15: memref<24x72xf32, #tpu.memory_space<vmem>>, %arg16: memref<24x1xf32, #tpu.memory_space<vmem>>, %arg17: memref<24x16xf32, #tpu.memory_space<vmem>>, %arg18: memref<24x1xf32, #tpu.memory_space<vmem>>, %arg19: memref<24x128xf32, #tpu.memory_space<vmem>>) attributes {dimension_semantics = [#tpu.dimension_semantics<parallel>], iteration_bounds = array<i64: 2>, scalar_prefetch = 0 : i64, scratch_operands = 0 : i64, tpu.core_type = #tpu.core_type<tc>, window_params = [{pipeline_mode = #tpu.pipeline_mode<synchronous>, transform_indices = @transform_0, window_bounds = array<i64: 1, 128>}, {transform_indices = @transform_1, window_bounds = array<i64: 8, 128>}, {pipeline_mode = #tpu.pipeline_mode<synchronous>, transform_indices = @transform_2, window_bounds = array<i64: 16, 24>}, {pipeline_mode = #tpu.pipeline_mode<synchronous>, transform_indices = @transform_3, window_bounds = array<i64: 16, 1>}, {pipeline_mode = #tpu.pipeline_mode<synchronous>, transform_indices = @transform_4, window_bounds = array<i64: 16, 48>}, {pipeline_mode = #tpu.pipeline_mode<synchronous>, transform_indices = @transform_5, window_bounds = array<i64: 16, 1>}, {pipeline_mode = #tpu.pipeline_mode<synchronous>, transform_indices = @transform_6, window_bounds = array<i64: 16, 8>}, {pipeline_mode = #tpu.pipeline_mode<synchronous>, transform_indices = @transform_7, window_bounds = array<i64: 16, 1>}, {pipeline_mode = #tpu.pipeline_mode<synchronous>, transform_indices = @transform_8, window_bounds = array<i64: 16, 48>}, {pipeline_mode = #tpu.pipeline_mode<synchronous>, transform_indices = @transform_9, window_bounds = array<i64: 16, 1>}, {pipeline_mode = #tpu.pipeline_mode<synchronous>, transform_indices = @transform_10, window_bounds = array<i64: 16, 48>}, {pipeline_mode = #tpu.pipeline_mode<synchronous>, transform_indices = @transform_11, window_bounds = array<i64: 16, 1>}, {pipeline_mode = #tpu.pipeline_mode<synchronous>, transform_indices = @transform_12, window_bounds = array<i64: 24, 48>}, {pipeline_mode = #tpu.pipeline_mode<synchronous>, transform_indices = @transform_13, window_bounds = array<i64: 24, 1>}, {pipeline_mode = #tpu.pipeline_mode<synchronous>, transform_indices = @transform_14, window_bounds = array<i64: 24, 72>}, {pipeline_mode = #tpu.pipeline_mode<synchronous>, transform_indices = @transform_15, window_bounds = array<i64: 24, 1>}, {pipeline_mode = #tpu.pipeline_mode<synchronous>, transform_indices = @transform_16, window_bounds = array<i64: 24, 16>}, {pipeline_mode = #tpu.pipeline_mode<synchronous>, transform_indices = @transform_17, window_bounds = array<i64: 24, 1>}, {transform_indices = @transform_18, window_bounds = array<i64: 24, 128>}]} {
    %c0 = arith.constant 0 : index
    %c0_0 = arith.constant 0 : index
    %0 = vector.load %arg1[%c0, %c0_0] : memref<1x128xi32, #tpu.memory_space<vmem>>, vector<1x128xi32>
    %c0_1 = arith.constant 0 : index
    %c0_2 = arith.constant 0 : index
    %1 = vector.load %arg2[%c0_1, %c0_2] : memref<8x128xf32, #tpu.memory_space<vmem>>, vector<8x128xf32>
    %c1_i32 = arith.constant 1 : i32
    %2 = vector.broadcast %c1_i32 : i32 to vector<1x128xi32>
    %3 = arith.cmpi sge, %0, %2 : vector<1x128xi32>
    %cst = arith.constant 1.000000e+00 : f32
    %cst_3 = arith.constant 0.000000e+00 : f32
    %4 = vector.broadcast %cst : f32 to vector<1x128xf32>
    %5 = vector.broadcast %cst_3 : f32 to vector<1x128xf32>
    %6 = arith.select %3, %4, %5 : vector<1x128xi1>, vector<1x128xf32>
    %c2_i32 = arith.constant 2 : i32
    %7 = vector.broadcast %c2_i32 : i32 to vector<1x128xi32>
    %8 = arith.cmpi sge, %0, %7 : vector<1x128xi32>
    %cst_4 = arith.constant 1.000000e+00 : f32
    %cst_5 = arith.constant 0.000000e+00 : f32
    %9 = vector.broadcast %cst_4 : f32 to vector<1x128xf32>
    %10 = vector.broadcast %cst_5 : f32 to vector<1x128xf32>
    %11 = arith.select %8, %9, %10 : vector<1x128xi1>, vector<1x128xf32>
    %c4_i32 = arith.constant 4 : i32
    %12 = vector.broadcast %c4_i32 : i32 to vector<1x128xi32>
    %13 = arith.cmpi sge, %0, %12 : vector<1x128xi32>
    %cst_6 = arith.constant 1.000000e+00 : f32
    %cst_7 = arith.constant 0.000000e+00 : f32
    %14 = vector.broadcast %cst_6 : f32 to vector<1x128xf32>
    %15 = vector.broadcast %cst_7 : f32 to vector<1x128xf32>
    %16 = arith.select %13, %14, %15 : vector<1x128xi1>, vector<1x128xf32>
    %c8_i32 = arith.constant 8 : i32
    %17 = vector.broadcast %c8_i32 : i32 to vector<1x128xi32>
    %18 = arith.cmpi sge, %0, %17 : vector<1x128xi32>
    %cst_8 = arith.constant 1.000000e+00 : f32
    %cst_9 = arith.constant 0.000000e+00 : f32
    %19 = vector.broadcast %cst_8 : f32 to vector<1x128xf32>
    %20 = vector.broadcast %cst_9 : f32 to vector<1x128xf32>
    %21 = arith.select %18, %19, %20 : vector<1x128xi1>, vector<1x128xf32>
    %c2_i32_10 = arith.constant 2 : i32
    %22 = tpu.dynamic_rotate %1 by %c2_i32_10 dim 1 : vector<8x128xf32>, i32 -> vector<8x128xf32>
    %23 = vector.broadcast %11 : vector<1x128xf32> to vector<8x128xf32>
    %24 = arith.mulf %22, %23 : vector<8x128xf32>
    %c1_i32_11 = arith.constant 1 : i32
    %25 = tpu.dynamic_rotate %1 by %c1_i32_11 dim 1 : vector<8x128xf32>, i32 -> vector<8x128xf32>
    %26 = vector.broadcast %6 : vector<1x128xf32> to vector<8x128xf32>
    %27 = arith.mulf %25, %26 : vector<8x128xf32>
    %28 = tpu.concatenate %24, %27, %1 in 0 : vector<8x128xf32>, vector<8x128xf32>, vector<8x128xf32> -> vector<24x128xf32>
    %c0_12 = arith.constant 0 : index
    %c0_13 = arith.constant 0 : index
    %29 = vector.load %arg3[%c0_12, %c0_13] : memref<16x24xf32, #tpu.memory_space<vmem>>, vector<16x24xf32>
    %cst_14 = arith.constant dense<0.000000e+00> : vector<16x128xf32>
    %30 = tpu.matmul %29, %28, %cst_14 {dimension_numbers = #tpu.dot_dimension_numbers<[1], [0], [0], [1], [0, 0, 1, 1], [], []>} : vector<16x24xf32>, vector<24x128xf32>, vector<16x128xf32> -> vector<16x128xf32>
    %c0_15 = arith.constant 0 : index
    %c0_16 = arith.constant 0 : index
    %31 = vector.load %arg4[%c0_15, %c0_16] : memref<16x1xf32, #tpu.memory_space<vmem>>, vector<16x1xf32>
    %32 = vector.broadcast %31 : vector<16x1xf32> to vector<16x128xf32>
    %33 = arith.addf %30, %32 : vector<16x128xf32>
    %cst_17 = arith.constant 0.000000e+00 : f32
    %34 = vector.broadcast %cst_17 : f32 to vector<16x128xf32>
    %35 = arith.maximumf %33, %34 : vector<16x128xf32>
    %c2_i32_18 = arith.constant 2 : i32
    %36 = tpu.dynamic_rotate %35 by %c2_i32_18 dim 1 : vector<16x128xf32>, i32 -> vector<16x128xf32>
    %37 = vector.broadcast %11 : vector<1x128xf32> to vector<16x128xf32>
    %38 = arith.mulf %36, %37 : vector<16x128xf32>
    %c1_i32_19 = arith.constant 1 : i32
    %39 = tpu.dynamic_rotate %35 by %c1_i32_19 dim 1 : vector<16x128xf32>, i32 -> vector<16x128xf32>
    %40 = vector.broadcast %6 : vector<1x128xf32> to vector<16x128xf32>
    %41 = arith.mulf %39, %40 : vector<16x128xf32>
    %42 = tpu.concatenate %38, %41, %35 in 0 : vector<16x128xf32>, vector<16x128xf32>, vector<16x128xf32> -> vector<48x128xf32>
    %c0_20 = arith.constant 0 : index
    %c0_21 = arith.constant 0 : index
    %43 = vector.load %arg5[%c0_20, %c0_21] : memref<16x48xf32, #tpu.memory_space<vmem>>, vector<16x48xf32>
    %cst_22 = arith.constant dense<0.000000e+00> : vector<16x128xf32>
    %44 = tpu.matmul %43, %42, %cst_22 {dimension_numbers = #tpu.dot_dimension_numbers<[1], [0], [0], [1], [0, 0, 1, 1], [], []>} : vector<16x48xf32>, vector<48x128xf32>, vector<16x128xf32> -> vector<16x128xf32>
    %c0_23 = arith.constant 0 : index
    %c0_24 = arith.constant 0 : index
    %45 = vector.load %arg6[%c0_23, %c0_24] : memref<16x1xf32, #tpu.memory_space<vmem>>, vector<16x1xf32>
    %46 = vector.broadcast %45 : vector<16x1xf32> to vector<16x128xf32>
    %47 = arith.addf %44, %46 : vector<16x128xf32>
    %cst_25 = arith.constant 0.000000e+00 : f32
    %48 = vector.broadcast %cst_25 : f32 to vector<16x128xf32>
    %49 = arith.maximumf %47, %48 : vector<16x128xf32>
    %c0_26 = arith.constant 0 : index
    %c0_27 = arith.constant 0 : index
    %50 = vector.load %arg7[%c0_26, %c0_27] : memref<16x8xf32, #tpu.memory_space<vmem>>, vector<16x8xf32>
    %cst_28 = arith.constant dense<0.000000e+00> : vector<16x128xf32>
    %51 = tpu.matmul %50, %1, %cst_28 {dimension_numbers = #tpu.dot_dimension_numbers<[1], [0], [0], [1], [0, 0, 1, 1], [], []>} : vector<16x8xf32>, vector<8x128xf32>, vector<16x128xf32> -> vector<16x128xf32>
    %c0_29 = arith.constant 0 : index
    %c0_30 = arith.constant 0 : index
    %52 = vector.load %arg8[%c0_29, %c0_30] : memref<16x1xf32, #tpu.memory_space<vmem>>, vector<16x1xf32>
    %53 = vector.broadcast %52 : vector<16x1xf32> to vector<16x128xf32>
    %54 = arith.addf %51, %53 : vector<16x128xf32>
    %55 = arith.addf %49, %54 : vector<16x128xf32>
    %cst_31 = arith.constant 0.000000e+00 : f32
    %56 = vector.broadcast %cst_31 : f32 to vector<16x128xf32>
    %57 = arith.maximumf %55, %56 : vector<16x128xf32>
    %c4_i32_32 = arith.constant 4 : i32
    %58 = tpu.dynamic_rotate %57 by %c4_i32_32 dim 1 : vector<16x128xf32>, i32 -> vector<16x128xf32>
    %59 = vector.broadcast %16 : vector<1x128xf32> to vector<16x128xf32>
    %60 = arith.mulf %58, %59 : vector<16x128xf32>
    %c2_i32_33 = arith.constant 2 : i32
    %61 = tpu.dynamic_rotate %57 by %c2_i32_33 dim 1 : vector<16x128xf32>, i32 -> vector<16x128xf32>
    %62 = vector.broadcast %11 : vector<1x128xf32> to vector<16x128xf32>
    %63 = arith.mulf %61, %62 : vector<16x128xf32>
    %64 = tpu.concatenate %60, %63, %57 in 0 : vector<16x128xf32>, vector<16x128xf32>, vector<16x128xf32> -> vector<48x128xf32>
    %c0_34 = arith.constant 0 : index
    %c0_35 = arith.constant 0 : index
    %65 = vector.load %arg9[%c0_34, %c0_35] : memref<16x48xf32, #tpu.memory_space<vmem>>, vector<16x48xf32>
    %cst_36 = arith.constant dense<0.000000e+00> : vector<16x128xf32>
    %66 = tpu.matmul %65, %64, %cst_36 {dimension_numbers = #tpu.dot_dimension_numbers<[1], [0], [0], [1], [0, 0, 1, 1], [], []>} : vector<16x48xf32>, vector<48x128xf32>, vector<16x128xf32> -> vector<16x128xf32>
    %c0_37 = arith.constant 0 : index
    %c0_38 = arith.constant 0 : index
    %67 = vector.load %arg10[%c0_37, %c0_38] : memref<16x1xf32, #tpu.memory_space<vmem>>, vector<16x1xf32>
    %68 = vector.broadcast %67 : vector<16x1xf32> to vector<16x128xf32>
    %69 = arith.addf %66, %68 : vector<16x128xf32>
    %cst_39 = arith.constant 0.000000e+00 : f32
    %70 = vector.broadcast %cst_39 : f32 to vector<16x128xf32>
    %71 = arith.maximumf %69, %70 : vector<16x128xf32>
    %c4_i32_40 = arith.constant 4 : i32
    %72 = tpu.dynamic_rotate %71 by %c4_i32_40 dim 1 : vector<16x128xf32>, i32 -> vector<16x128xf32>
    %73 = vector.broadcast %16 : vector<1x128xf32> to vector<16x128xf32>
    %74 = arith.mulf %72, %73 : vector<16x128xf32>
    %c2_i32_41 = arith.constant 2 : i32
    %75 = tpu.dynamic_rotate %71 by %c2_i32_41 dim 1 : vector<16x128xf32>, i32 -> vector<16x128xf32>
    %76 = vector.broadcast %11 : vector<1x128xf32> to vector<16x128xf32>
    %77 = arith.mulf %75, %76 : vector<16x128xf32>
    %78 = tpu.concatenate %74, %77, %71 in 0 : vector<16x128xf32>, vector<16x128xf32>, vector<16x128xf32> -> vector<48x128xf32>
    %c0_42 = arith.constant 0 : index
    %c0_43 = arith.constant 0 : index
    %79 = vector.load %arg11[%c0_42, %c0_43] : memref<16x48xf32, #tpu.memory_space<vmem>>, vector<16x48xf32>
    %cst_44 = arith.constant dense<0.000000e+00> : vector<16x128xf32>
    %80 = tpu.matmul %79, %78, %cst_44 {dimension_numbers = #tpu.dot_dimension_numbers<[1], [0], [0], [1], [0, 0, 1, 1], [], []>} : vector<16x48xf32>, vector<48x128xf32>, vector<16x128xf32> -> vector<16x128xf32>
    %c0_45 = arith.constant 0 : index
    %c0_46 = arith.constant 0 : index
    %81 = vector.load %arg12[%c0_45, %c0_46] : memref<16x1xf32, #tpu.memory_space<vmem>>, vector<16x1xf32>
    %82 = vector.broadcast %81 : vector<16x1xf32> to vector<16x128xf32>
    %83 = arith.addf %80, %82 : vector<16x128xf32>
    %cst_47 = arith.constant 0.000000e+00 : f32
    %84 = vector.broadcast %cst_47 : f32 to vector<16x128xf32>
    %85 = arith.maximumf %83, %84 : vector<16x128xf32>
    %86 = arith.addf %85, %57 : vector<16x128xf32>
    %cst_48 = arith.constant 0.000000e+00 : f32
    %87 = vector.broadcast %cst_48 : f32 to vector<16x128xf32>
    %88 = arith.maximumf %86, %87 : vector<16x128xf32>
    %c8_i32_49 = arith.constant 8 : i32
    %89 = tpu.dynamic_rotate %88 by %c8_i32_49 dim 1 : vector<16x128xf32>, i32 -> vector<16x128xf32>
    %90 = vector.broadcast %21 : vector<1x128xf32> to vector<16x128xf32>
    %91 = arith.mulf %89, %90 : vector<16x128xf32>
    %c4_i32_50 = arith.constant 4 : i32
    %92 = tpu.dynamic_rotate %88 by %c4_i32_50 dim 1 : vector<16x128xf32>, i32 -> vector<16x128xf32>
    %93 = vector.broadcast %16 : vector<1x128xf32> to vector<16x128xf32>
    %94 = arith.mulf %92, %93 : vector<16x128xf32>
    %95 = tpu.concatenate %91, %94, %88 in 0 : vector<16x128xf32>, vector<16x128xf32>, vector<16x128xf32> -> vector<48x128xf32>
    %c0_51 = arith.constant 0 : index
    %c0_52 = arith.constant 0 : index
    %96 = vector.load %arg13[%c0_51, %c0_52] : memref<24x48xf32, #tpu.memory_space<vmem>>, vector<24x48xf32>
    %cst_53 = arith.constant dense<0.000000e+00> : vector<24x128xf32>
    %97 = tpu.matmul %96, %95, %cst_53 {dimension_numbers = #tpu.dot_dimension_numbers<[1], [0], [0], [1], [0, 0, 1, 1], [], []>} : vector<24x48xf32>, vector<48x128xf32>, vector<24x128xf32> -> vector<24x128xf32>
    %c0_54 = arith.constant 0 : index
    %c0_55 = arith.constant 0 : index
    %98 = vector.load %arg14[%c0_54, %c0_55] : memref<24x1xf32, #tpu.memory_space<vmem>>, vector<24x1xf32>
    %99 = vector.broadcast %98 : vector<24x1xf32> to vector<24x128xf32>
    %100 = arith.addf %97, %99 : vector<24x128xf32>
    %cst_56 = arith.constant 0.000000e+00 : f32
    %101 = vector.broadcast %cst_56 : f32 to vector<24x128xf32>
    %102 = arith.maximumf %100, %101 : vector<24x128xf32>
    %c8_i32_57 = arith.constant 8 : i32
    %103 = tpu.dynamic_rotate %102 by %c8_i32_57 dim 1 : vector<24x128xf32>, i32 -> vector<24x128xf32>
    %104 = vector.broadcast %21 : vector<1x128xf32> to vector<24x128xf32>
    %105 = arith.mulf %103, %104 : vector<24x128xf32>
    %c4_i32_58 = arith.constant 4 : i32
    %106 = tpu.dynamic_rotate %102 by %c4_i32_58 dim 1 : vector<24x128xf32>, i32 -> vector<24x128xf32>
    %107 = vector.broadcast %16 : vector<1x128xf32> to vector<24x128xf32>
    %108 = arith.mulf %106, %107 : vector<24x128xf32>
    %109 = tpu.concatenate %105, %108, %102 in 0 : vector<24x128xf32>, vector<24x128xf32>, vector<24x128xf32> -> vector<72x128xf32>
    %c0_59 = arith.constant 0 : index
    %c0_60 = arith.constant 0 : index
    %110 = vector.load %arg15[%c0_59, %c0_60] : memref<24x72xf32, #tpu.memory_space<vmem>>, vector<24x72xf32>
    %cst_61 = arith.constant dense<0.000000e+00> : vector<24x128xf32>
    %111 = tpu.matmul %110, %109, %cst_61 {dimension_numbers = #tpu.dot_dimension_numbers<[1], [0], [0], [1], [0, 0, 1, 1], [], []>} : vector<24x72xf32>, vector<72x128xf32>, vector<24x128xf32> -> vector<24x128xf32>
    %c0_62 = arith.constant 0 : index
    %c0_63 = arith.constant 0 : index
    %112 = vector.load %arg16[%c0_62, %c0_63] : memref<24x1xf32, #tpu.memory_space<vmem>>, vector<24x1xf32>
    %113 = vector.broadcast %112 : vector<24x1xf32> to vector<24x128xf32>
    %114 = arith.addf %111, %113 : vector<24x128xf32>
    %cst_64 = arith.constant 0.000000e+00 : f32
    %115 = vector.broadcast %cst_64 : f32 to vector<24x128xf32>
    %116 = arith.maximumf %114, %115 : vector<24x128xf32>
    %c0_65 = arith.constant 0 : index
    %c0_66 = arith.constant 0 : index
    %117 = vector.load %arg17[%c0_65, %c0_66] : memref<24x16xf32, #tpu.memory_space<vmem>>, vector<24x16xf32>
    %cst_67 = arith.constant dense<0.000000e+00> : vector<24x128xf32>
    %118 = tpu.matmul %117, %88, %cst_67 {dimension_numbers = #tpu.dot_dimension_numbers<[1], [0], [0], [1], [0, 0, 1, 1], [], []>} : vector<24x16xf32>, vector<16x128xf32>, vector<24x128xf32> -> vector<24x128xf32>
    %c0_68 = arith.constant 0 : index
    %c0_69 = arith.constant 0 : index
    %119 = vector.load %arg18[%c0_68, %c0_69] : memref<24x1xf32, #tpu.memory_space<vmem>>, vector<24x1xf32>
    %120 = vector.broadcast %119 : vector<24x1xf32> to vector<24x128xf32>
    %121 = arith.addf %118, %120 : vector<24x128xf32>
    %122 = arith.addf %116, %121 : vector<24x128xf32>
    %cst_70 = arith.constant 0.000000e+00 : f32
    %123 = vector.broadcast %cst_70 : f32 to vector<24x128xf32>
    %124 = arith.maximumf %122, %123 : vector<24x128xf32>
    %c0_71 = arith.constant 0 : index
    %c0_72 = arith.constant 0 : index
    %125 = vector.load %arg19[%c0_71, %c0_72] : memref<24x128xf32, #tpu.memory_space<vmem>>, vector<24x128xf32>
    tpu.vector_store %arg19[%c0_71, %c0_72], %124 {strides = array<i32>} : memref<24x128xf32, #tpu.memory_space<vmem>>, vector<24x128xf32>,
    return
  }
  func.func @transform_0(%arg0: i32) -> (i32, i32) {
    %c0_i32 = arith.constant 0 : i32
    %c0_i32_0 = arith.constant 0 : i32
    %c0_i32_1 = arith.constant 0 : i32
    return %c0_i32, %c0_i32_0 : i32, i32
  }
  func.func @transform_1(%arg0: i32) -> (i32, i32) {
    %c0_i32 = arith.constant 0 : i32
    %c0_i32_0 = arith.constant 0 : i32
    return %c0_i32, %arg0 : i32, i32
  }
  func.func @transform_2(%arg0: i32) -> (i32, i32) {
    %c0_i32 = arith.constant 0 : i32
    %c0_i32_0 = arith.constant 0 : i32
    %c0_i32_1 = arith.constant 0 : i32
    return %c0_i32, %c0_i32_0 : i32, i32
  }
  func.func @transform_3(%arg0: i32) -> (i32, i32) {
    %c0_i32 = arith.constant 0 : i32
    %c0_i32_0 = arith.constant 0 : i32
    %c0_i32_1 = arith.constant 0 : i32
    return %c0_i32, %c0_i32_0 : i32, i32
  }
  func.func @transform_4(%arg0: i32) -> (i32, i32) {
    %c0_i32 = arith.constant 0 : i32
    %c0_i32_0 = arith.constant 0 : i32
    %c0_i32_1 = arith.constant 0 : i32
    return %c0_i32, %c0_i32_0 : i32, i32
  }
  func.func @transform_5(%arg0: i32) -> (i32, i32) {
    %c0_i32 = arith.constant 0 : i32
    %c0_i32_0 = arith.constant 0 : i32
    %c0_i32_1 = arith.constant 0 : i32
    return %c0_i32, %c0_i32_0 : i32, i32
  }
  func.func @transform_6(%arg0: i32) -> (i32, i32) {
    %c0_i32 = arith.constant 0 : i32
    %c0_i32_0 = arith.constant 0 : i32
    %c0_i32_1 = arith.constant 0 : i32
    return %c0_i32, %c0_i32_0 : i32, i32
  }
  func.func @transform_7(%arg0: i32) -> (i32, i32) {
    %c0_i32 = arith.constant 0 : i32
    %c0_i32_0 = arith.constant 0 : i32
    %c0_i32_1 = arith.constant 0 : i32
    return %c0_i32, %c0_i32_0 : i32, i32
  }
  func.func @transform_8(%arg0: i32) -> (i32, i32) {
    %c0_i32 = arith.constant 0 : i32
    %c0_i32_0 = arith.constant 0 : i32
    %c0_i32_1 = arith.constant 0 : i32
    return %c0_i32, %c0_i32_0 : i32, i32
  }
  func.func @transform_9(%arg0: i32) -> (i32, i32) {
    %c0_i32 = arith.constant 0 : i32
    %c0_i32_0 = arith.constant 0 : i32
    %c0_i32_1 = arith.constant 0 : i32
    return %c0_i32, %c0_i32_0 : i32, i32
  }
  func.func @transform_10(%arg0: i32) -> (i32, i32) {
    %c0_i32 = arith.constant 0 : i32
    %c0_i32_0 = arith.constant 0 : i32
    %c0_i32_1 = arith.constant 0 : i32
    return %c0_i32, %c0_i32_0 : i32, i32
  }
  func.func @transform_11(%arg0: i32) -> (i32, i32) {
    %c0_i32 = arith.constant 0 : i32
    %c0_i32_0 = arith.constant 0 : i32
    %c0_i32_1 = arith.constant 0 : i32
    return %c0_i32, %c0_i32_0 : i32, i32
  }
  func.func @transform_12(%arg0: i32) -> (i32, i32) {
    %c0_i32 = arith.constant 0 : i32
    %c0_i32_0 = arith.constant 0 : i32
    %c0_i32_1 = arith.constant 0 : i32
    return %c0_i32, %c0_i32_0 : i32, i32
  }
  func.func @transform_13(%arg0: i32) -> (i32, i32) {
    %c0_i32 = arith.constant 0 : i32
    %c0_i32_0 = arith.constant 0 : i32
    %c0_i32_1 = arith.constant 0 : i32
    return %c0_i32, %c0_i32_0 : i32, i32
  }
  func.func @transform_14(%arg0: i32) -> (i32, i32) {
    %c0_i32 = arith.constant 0 : i32
    %c0_i32_0 = arith.constant 0 : i32
    %c0_i32_1 = arith.constant 0 : i32
    return %c0_i32, %c0_i32_0 : i32, i32
  }
  func.func @transform_15(%arg0: i32) -> (i32, i32) {
    %c0_i32 = arith.constant 0 : i32
    %c0_i32_0 = arith.constant 0 : i32
    %c0_i32_1 = arith.constant 0 : i32
    return %c0_i32, %c0_i32_0 : i32, i32
  }
  func.func @transform_16(%arg0: i32) -> (i32, i32) {
    %c0_i32 = arith.constant 0 : i32
    %c0_i32_0 = arith.constant 0 : i32
    %c0_i32_1 = arith.constant 0 : i32
    return %c0_i32, %c0_i32_0 : i32, i32
  }
  func.func @transform_17(%arg0: i32) -> (i32, i32) {
    %c0_i32 = arith.constant 0 : i32
    %c0_i32_0 = arith.constant 0 : i32
    %c0_i32_1 = arith.constant 0 : i32
    return %c0_i32, %c0_i32_0 : i32, i32
  }
  func.func @transform_18(%arg0: i32) -> (i32, i32) {
    %c0_i32 = arith.constant 0 : i32
    %c0_i32_0 = arith.constant 0 : i32
    return %c0_i32, %arg0 : i32, i32
  }
}

</mosaic_0001>

<llo_original>
// kernel: tpu_custom_call.1
$region0: #{tpu_custom_call.1}
  #allocation0 [shape = 'u32[]', space=smem, size = 0x4, offset = 0x4, fixed_abs, tag = 'smem constant byte address 0x4 - core index']
  #allocation1 [shape = 'u32[144,128]{1,0:T(1,128)}', space=vmem, size = 0x12000, scoped, tag = 'internal scratch']
  %s0 = inlined_call_operand.vmem [shape: s32[1,128], index: 0, kind: input, shape index: {}]
  %s1 = inlined_call_operand.vmem [shape: f32[8,256], index: 1, kind: input, shape index: {}]
  %s2 = inlined_call_operand.vmem [shape: f32[16,24], index: 2, kind: input, shape index: {}]
  %s3 = inlined_call_operand.vmem [shape: f32[16,1], index: 3, kind: input, shape index: {}]
  %s4 = inlined_call_operand.vmem [shape: f32[16,48], index: 4, kind: input, shape index: {}]
  %s5 = inlined_call_operand.vmem [shape: f32[16,1], index: 5, kind: input, shape index: {}]
  %s6 = inlined_call_operand.vmem [shape: f32[16,8], index: 6, kind: input, shape index: {}]
  %s7 = inlined_call_operand.vmem [shape: f32[16,1], index: 7, kind: input, shape index: {}]
  %s8 = inlined_call_operand.vmem [shape: f32[16,48], index: 8, kind: input, shape index: {}]
  %s9 = inlined_call_operand.vmem [shape: f32[16,1], index: 9, kind: input, shape index: {}]
  %s10 = inlined_call_operand.vmem [shape: f32[16,48], index: 10, kind: input, shape index: {}]
  %s11 = inlined_call_operand.vmem [shape: f32[16,1], index: 11, kind: input, shape index: {}]
  %s12 = inlined_call_operand.vmem [shape: f32[24,48], index: 12, kind: input, shape index: {}]
  %s13 = inlined_call_operand.vmem [shape: f32[24,1], index: 13, kind: input, shape index: {}]
  %s14 = inlined_call_operand.vmem [shape: f32[24,72], index: 14, kind: input, shape index: {}]
  %s15 = inlined_call_operand.vmem [shape: f32[24,1], index: 15, kind: input, shape index: {}]
  %s16 = inlined_call_operand.vmem [shape: f32[24,16], index: 16, kind: input, shape index: {}]
  %s17 = inlined_call_operand.vmem [shape: f32[24,1], index: 17, kind: input, shape index: {}]
  %s18 = inlined_call_operand.hbm [shape: f32[24,256], index: 18, kind: output, shape index: {}]
  %s19 = sld [smem:[#allocation0]]
  $region105: #{tpu_custom_call.1} parent=0
    _
  %s21 = ssub.s32 1, %s19
  %s22 = scalar_select 0, %s21, %s19
  $region1: #{tpu_custom_call.1} parent=0
    #allocation2 [shape = 'u8[24576]{0}', space=vmem, size = 0x6000, scoped, tag = 'output window, operand 0']
    #allocation3 [shape = 's32[2]{0}', space=sflag, size = 0x8, scoped, tag = 'scoped memory for tpu_custom_call.1']
    %23 = vsyncpa [#allocation3], 0
    %s24 = scalar_lea.sflag [#allocation3], 1
    %25 = vsyncpa %s24, 0
    loop: start=0, step=1, limit=4
    $region2: #{tpu_custom_call.1} parent=1 // loop_pre_header
      _
    $region3: #{tpu_custom_call.1} parent=1 // loop_header
      %s27 = sphi 0, %s31
      %p28 = scmp.ge.s32.totalorder %s27, 4
      %s35 = sphi 0, %s35
      %s37 = sphi 0, %s35
      %s38 = sphi 0, %s37
      %s52 = sphi 0, %s38
      %s58 = sphi 0, %s60
      %s61 = sphi 0, %s58
      %s62 = sphi 0, %s61
      %s78 = sphi 0, %s62
      %s82 = sphi 0, %s82
      %s84 = sphi 0, %s82
      %s85 = sphi 0, %s84
      %s99 = sphi 0, %s85
      %s103 = sphi 0, %s103
      %s105 = sphi 0, %s103
      %s106 = sphi 0, %s105
      %s120 = sphi 0, %s106
      %s124 = sphi 0, %s124
      %s126 = sphi 0, %s124
      %s127 = sphi 0, %s126
      %s141 = sphi 0, %s127
      %s145 = sphi 0, %s145
      %s147 = sphi 0, %s145
      %s148 = sphi 0, %s147
      %s162 = sphi 0, %s148
      %s166 = sphi 0, %s166
      %s168 = sphi 0, %s166
      %s169 = sphi 0, %s168
      %s183 = sphi 0, %s169
      %s187 = sphi 0, %s187
      %s189 = sphi 0, %s187
      %s190 = sphi 0, %s189
      %s204 = sphi 0, %s190
      %s208 = sphi 0, %s208
      %s210 = sphi 0, %s208
      %s211 = sphi 0, %s210
      %s225 = sphi 0, %s211
      %s229 = sphi 0, %s229
      %s231 = sphi 0, %s229
      %s232 = sphi 0, %s231
      %s246 = sphi 0, %s232
      %s250 = sphi 0, %s250
      %s252 = sphi 0, %s250
      %s253 = sphi 0, %s252
      %s267 = sphi 0, %s253
      %s271 = sphi 0, %s271
      %s273 = sphi 0, %s271
      %s274 = sphi 0, %s273
      %s288 = sphi 0, %s274
      %s292 = sphi 0, %s292
      %s294 = sphi 0, %s292
      %s295 = sphi 0, %s294
      %s309 = sphi 0, %s295
      %s313 = sphi 0, %s313
      %s315 = sphi 0, %s313
      %s316 = sphi 0, %s315
      %s330 = sphi 0, %s316
      %s334 = sphi 0, %s334
      %s336 = sphi 0, %s334
      %s337 = sphi 0, %s336
      %s351 = sphi 0, %s337
      %s355 = sphi 0, %s355
      %s357 = sphi 0, %s355
      %s358 = sphi 0, %s357
      %s372 = sphi 0, %s358
      %s376 = sphi 0, %s376
      %s378 = sphi 0, %s376
      %s379 = sphi 0, %s378
      %s393 = sphi 0, %s379
      %s397 = sphi 0, %s397
      %s399 = sphi 0, %s397
      %s400 = sphi 0, %s399
      %s414 = sphi 0, %s400
      %s420 = sphi 0, %s422
      %s423 = sphi 0, %s420
      %s424 = sphi 0, %s423
      %s440 = sphi 0, %s424
    $region4: #{tpu_custom_call.1} parent=1 // loop_header_branch
      %30 = sbr.rel (%p28) target = $region8
    $region5: #{tpu_custom_call.1} parent=1 // loop_body
      %s32 = ssub.s32 %s27, 1
      %s33 = ssub.s32 %s27, 2
      %s34 = sadd.s32 %s27, 1
      %s36 = sadd.s32 %s35, 1
      %p39 = scmp.eq.s32.totalorder %s27, 1
      %p40 = scmp.ne.s32.totalorder %s35, %s37
      %p41 = scmp.eq.s32.totalorder %s27, 0
      %p42 = por %p40, %p41
      %p43 = scmp.ne.s32.totalorder %s35, %s37
      %p44 = scmp.eq.s32.totalorder %s32, 1
      %p45 = por %p43, %p44
      %p46 = scmp.ne.s32.totalorder %s37, %s38
      %p47 = scmp.eq.s32.totalorder %s32, 0
      %p48 = por %p46, %p47
      %p49 = scmp.ne.s32.totalorder %s37, %s38
      %p50 = scmp.eq.s32.totalorder %s33, 1
      %p51 = por %p49, %p50
      %p53 = scmp.ne.s32.totalorder %s38, %s52
      %p54 = scmp.eq.s32.totalorder %s33, 0
      %p55 = por %p53, %p54
      %s56 = ssub.s32 %s27, %s34
      %p57 = scmp.eq.s32.totalorder %s56, 0
      %s59 = sadd.s32 %s58, 1
      %s60 = scalar_select %p57, %s58, %s59
      %p63 = pneg %p57
      %p64 = scmp.eq.s32.totalorder %s27, 1
      %p65 = por %p63, %p64
      %p66 = scmp.ne.s32.totalorder %s58, %s61
      %p67 = scmp.eq.s32.totalorder %s27, 0
      %p68 = por %p66, %p67
      %p69 = scmp.ne.s32.totalorder %s58, %s61
      %p70 = scmp.eq.s32.totalorder %s32, 1
      %p71 = por %p69, %p70
      %p72 = scmp.ne.s32.totalorder %s61, %s62
      %p73 = scmp.eq.s32.totalorder %s32, 0
      %p74 = por %p72, %p73
      %p75 = scmp.ne.s32.totalorder %s61, %s62
      %p76 = scmp.eq.s32.totalorder %s33, 1
      %p77 = por %p75, %p76
      %p79 = scmp.ne.s32.totalorder %s62, %s78
      %p80 = scmp.eq.s32.totalorder %s33, 0
      %p81 = por %p79, %p80
      %s83 = sadd.s32 %s82, 1
      %p86 = scmp.eq.s32.totalorder %s27, 1
      %p87 = scmp.ne.s32.totalorder %s82, %s84
      %p88 = scmp.eq.s32.totalorder %s27, 0
      %p89 = por %p87, %p88
      %p90 = scmp.ne.s32.totalorder %s82, %s84
      %p91 = scmp.eq.s32.totalorder %s32, 1
      %p92 = por %p90, %p91
      %p93 = scmp.ne.s32.totalorder %s84, %s85
      %p94 = scmp.eq.s32.totalorder %s32, 0
      %p95 = por %p93, %p94
      %p96 = scmp.ne.s32.totalorder %s84, %s85
      %p97 = scmp.eq.s32.totalorder %s33, 1
      %p98 = por %p96, %p97
      %p100 = scmp.ne.s32.totalorder %s85, %s99
      %p101 = scmp.eq.s32.totalorder %s33, 0
      %p102 = por %p100, %p101
      %s104 = sadd.s32 %s103, 1
      %p107 = scmp.eq.s32.totalorder %s27, 1
      %p108 = scmp.ne.s32.totalorder %s103, %s105
      %p109 = scmp.eq.s32.totalorder %s27, 0
      %p110 = por %p108, %p109
      %p111 = scmp.ne.s32.totalorder %s103, %s105
      %p112 = scmp.eq.s32.totalorder %s32, 1
      %p113 = por %p111, %p112
      %p114 = scmp.ne.s32.totalorder %s105, %s106
      %p115 = scmp.eq.s32.totalorder %s32, 0
      %p116 = por %p114, %p115
      %p117 = scmp.ne.s32.totalorder %s105, %s106
      %p118 = scmp.eq.s32.totalorder %s33, 1
      %p119 = por %p117, %p118
      %p121 = scmp.ne.s32.totalorder %s106, %s120
      %p122 = scmp.eq.s32.totalorder %s33, 0
      %p123 = por %p121, %p122
      %s125 = sadd.s32 %s124, 1
      %p128 = scmp.eq.s32.totalorder %s27, 1
      %p129 = scmp.ne.s32.totalorder %s124, %s126
      %p130 = scmp.eq.s32.totalorder %s27, 0
      %p131 = por %p129, %p130
      %p132 = scmp.ne.s32.totalorder %s124, %s126
      %p133 = scmp.eq.s32.totalorder %s32, 1
      %p134 = por %p132, %p133
      %p135 = scmp.ne.s32.totalorder %s126, %s127
      %p136 = scmp.eq.s32.totalorder %s32, 0
      %p137 = por %p135, %p136
      %p138 = scmp.ne.s32.totalorder %s126, %s127
      %p139 = scmp.eq.s32.totalorder %s33, 1
      %p140 = por %p138, %p139
      %p142 = scmp.ne.s32.totalorder %s127, %s141
      %p143 = scmp.eq.s32.totalorder %s33, 0
      %p144 = por %p142, %p143
      %s146 = sadd.s32 %s145, 1
      %p149 = scmp.eq.s32.totalorder %s27, 1
      %p150 = scmp.ne.s32.totalorder %s145, %s147
      %p151 = scmp.eq.s32.totalorder %s27, 0
      %p152 = por %p150, %p151
      %p153 = scmp.ne.s32.totalorder %s145, %s147
      %p154 = scmp.eq.s32.totalorder %s32, 1
      %p155 = por %p153, %p154
      %p156 = scmp.ne.s32.totalorder %s147, %s148
      %p157 = scmp.eq.s32.totalorder %s32, 0
      %p158 = por %p156, %p157
      %p159 = scmp.ne.s32.totalorder %s147, %s148
      %p160 = scmp.eq.s32.totalorder %s33, 1
      %p161 = por %p159, %p160
      %p163 = scmp.ne.s32.totalorder %s148, %s162
      %p164 = scmp.eq.s32.totalorder %s33, 0
      %p165 = por %p163, %p164
      %s167 = sadd.s32 %s166, 1
      %p170 = scmp.eq.s32.totalorder %s27, 1
      %p171 = scmp.ne.s32.totalorder %s166, %s168
      %p172 = scmp.eq.s32.totalorder %s27, 0
      %p173 = por %p171, %p172
      %p174 = scmp.ne.s32.totalorder %s166, %s168
      %p175 = scmp.eq.s32.totalorder %s32, 1
      %p176 = por %p174, %p175
      %p177 = scmp.ne.s32.totalorder %s168, %s169
      %p178 = scmp.eq.s32.totalorder %s32, 0
      %p179 = por %p177, %p178
      %p180 = scmp.ne.s32.totalorder %s168, %s169
      %p181 = scmp.eq.s32.totalorder %s33, 1
      %p182 = por %p180, %p181
      %p184 = scmp.ne.s32.totalorder %s169, %s183
      %p185 = scmp.eq.s32.totalorder %s33, 0
      %p186 = por %p184, %p185
      %s188 = sadd.s32 %s187, 1
      %p191 = scmp.eq.s32.totalorder %s27, 1
      %p192 = scmp.ne.s32.totalorder %s187, %s189
      %p193 = scmp.eq.s32.totalorder %s27, 0
      %p194 = por %p192, %p193
      %p195 = scmp.ne.s32.totalorder %s187, %s189
      %p196 = scmp.eq.s32.totalorder %s32, 1
      %p197 = por %p195, %p196
      %p198 = scmp.ne.s32.totalorder %s189, %s190
      %p199 = scmp.eq.s32.totalorder %s32, 0
      %p200 = por %p198, %p199
      %p201 = scmp.ne.s32.totalorder %s189, %s190
      %p202 = scmp.eq.s32.totalorder %s33, 1
      %p203 = por %p201, %p202
      %p205 = scmp.ne.s32.totalorder %s190, %s204
      %p206 = scmp.eq.s32.totalorder %s33, 0
      %p207 = por %p205, %p206
      %s209 = sadd.s32 %s208, 1
      %p212 = scmp.eq.s32.totalorder %s27, 1
      %p213 = scmp.ne.s32.totalorder %s208, %s210
      %p214 = scmp.eq.s32.totalorder %s27, 0
      %p215 = por %p213, %p214
      %p216 = scmp.ne.s32.totalorder %s208, %s210
      %p217 = scmp.eq.s32.totalorder %s32, 1
      %p218 = por %p216, %p217
      %p219 = scmp.ne.s32.totalorder %s210, %s211
      %p220 = scmp.eq.s32.totalorder %s32, 0
      %p221 = por %p219, %p220
      %p222 = scmp.ne.s32.totalorder %s210, %s211
      %p223 = scmp.eq.s32.totalorder %s33, 1
      %p224 = por %p222, %p223
      %p226 = scmp.ne.s32.totalorder %s211, %s225
      %p227 = scmp.eq.s32.totalorder %s33, 0
      %p228 = por %p226, %p227
      %s230 = sadd.s32 %s229, 1
      %p233 = scmp.eq.s32.totalorder %s27, 1
      %p234 = scmp.ne.s32.totalorder %s229, %s231
      %p235 = scmp.eq.s32.totalorder %s27, 0
      %p236 = por %p234, %p235
      %p237 = scmp.ne.s32.totalorder %s229, %s231
      %p238 = scmp.eq.s32.totalorder %s32, 1
      %p239 = por %p237, %p238
      %p240 = scmp.ne.s32.totalorder %s231, %s232
      %p241 = scmp.eq.s32.totalorder %s32, 0
      %p242 = por %p240, %p241
      %p243 = scmp.ne.s32.totalorder %s231, %s232
      %p244 = scmp.eq.s32.totalorder %s33, 1
      %p245 = por %p243, %p244
      %p247 = scmp.ne.s32.totalorder %s232, %s246
      %p248 = scmp.eq.s32.totalorder %s33, 0
      %p249 = por %p247, %p248
      %s251 = sadd.s32 %s250, 1
      %p254 = scmp.eq.s32.totalorder %s27, 1
      %p255 = scmp.ne.s32.totalorder %s250, %s252
      %p256 = scmp.eq.s32.totalorder %s27, 0
      %p257 = por %p255, %p256
      %p258 = scmp.ne.s32.totalorder %s250, %s252
      %p259 = scmp.eq.s32.totalorder %s32, 1
      %p260 = por %p258, %p259
      %p261 = scmp.ne.s32.totalorder %s252, %s253
      %p262 = scmp.eq.s32.totalorder %s32, 0
      %p263 = por %p261, %p262
      %p264 = scmp.ne.s32.totalorder %s252, %s253
      %p265 = scmp.eq.s32.totalorder %s33, 1
      %p266 = por %p264, %p265
      %p268 = scmp.ne.s32.totalorder %s253, %s267
      %p269 = scmp.eq.s32.totalorder %s33, 0
      %p270 = por %p268, %p269
      %s272 = sadd.s32 %s271, 1
      %p275 = scmp.eq.s32.totalorder %s27, 1
      %p276 = scmp.ne.s32.totalorder %s271, %s273
      %p277 = scmp.eq.s32.totalorder %s27, 0
      %p278 = por %p276, %p277
      %p279 = scmp.ne.s32.totalorder %s271, %s273
      %p280 = scmp.eq.s32.totalorder %s32, 1
      %p281 = por %p279, %p280
      %p282 = scmp.ne.s32.totalorder %s273, %s274
      %p283 = scmp.eq.s32.totalorder %s32, 0
      %p284 = por %p282, %p283
      %p285 = scmp.ne.s32.totalorder %s273, %s274
      %p286 = scmp.eq.s32.totalorder %s33, 1
      %p287 = por %p285, %p286
      %p289 = scmp.ne.s32.totalorder %s274, %s288
      %p290 = scmp.eq.s32.totalorder %s33, 0
      %p291 = por %p289, %p290
      %s293 = sadd.s32 %s292, 1
      %p296 = scmp.eq.s32.totalorder %s27, 1
      %p297 = scmp.ne.s32.totalorder %s292, %s294
      %p298 = scmp.eq.s32.totalorder %s27, 0
      %p299 = por %p297, %p298
      %p300 = scmp.ne.s32.totalorder %s292, %s294
      %p301 = scmp.eq.s32.totalorder %s32, 1
      %p302 = por %p300, %p301
      %p303 = scmp.ne.s32.totalorder %s294, %s295
      %p304 = scmp.eq.s32.totalorder %s32, 0
      %p305 = por %p303, %p304
      %p306 = scmp.ne.s32.totalorder %s294, %s295
      %p307 = scmp.eq.s32.totalorder %s33, 1
      %p308 = por %p306, %p307
      %p310 = scmp.ne.s32.totalorder %s295, %s309
      %p311 = scmp.eq.s32.totalorder %s33, 0
      %p312 = por %p310, %p311
      %s314 = sadd.s32 %s313, 1
      %p317 = scmp.eq.s32.totalorder %s27, 1
      %p318 = scmp.ne.s32.totalorder %s313, %s315
      %p319 = scmp.eq.s32.totalorder %s27, 0
      %p320 = por %p318, %p319
      %p321 = scmp.ne.s32.totalorder %s313, %s315
      %p322 = scmp.eq.s32.totalorder %s32, 1
      %p323 = por %p321, %p322
      %p324 = scmp.ne.s32.totalorder %s315, %s316
      %p325 = scmp.eq.s32.totalorder %s32, 0
      %p326 = por %p324, %p325
      %p327 = scmp.ne.s32.totalorder %s315, %s316
      %p328 = scmp.eq.s32.totalorder %s33, 1
      %p329 = por %p327, %p328
      %p331 = scmp.ne.s32.totalorder %s316, %s330
      %p332 = scmp.eq.s32.totalorder %s33, 0
      %p333 = por %p331, %p332
      %s335 = sadd.s32 %s334, 1
      %p338 = scmp.eq.s32.totalorder %s27, 1
      %p339 = scmp.ne.s32.totalorder %s334, %s336
      %p340 = scmp.eq.s32.totalorder %s27, 0
      %p341 = por %p339, %p340
      %p342 = scmp.ne.s32.totalorder %s334, %s336
      %p343 = scmp.eq.s32.totalorder %s32, 1
      %p344 = por %p342, %p343
      %p345 = scmp.ne.s32.totalorder %s336, %s337
      %p346 = scmp.eq.s32.totalorder %s32, 0
      %p347 = por %p345, %p346
      %p348 = scmp.ne.s32.totalorder %s336, %s337
      %p349 = scmp.eq.s32.totalorder %s33, 1
      %p350 = por %p348, %p349
      %p352 = scmp.ne.s32.totalorder %s337, %s351
      %p353 = scmp.eq.s32.totalorder %s33, 0
      %p354 = por %p352, %p353
      %s356 = sadd.s32 %s355, 1
      %p359 = scmp.eq.s32.totalorder %s27, 1
      %p360 = scmp.ne.s32.totalorder %s355, %s357
      %p361 = scmp.eq.s32.totalorder %s27, 0
      %p362 = por %p360, %p361
      %p363 = scmp.ne.s32.totalorder %s355, %s357
      %p364 = scmp.eq.s32.totalorder %s32, 1
      %p365 = por %p363, %p364
      %p366 = scmp.ne.s32.totalorder %s357, %s358
      %p367 = scmp.eq.s32.totalorder %s32, 0
      %p368 = por %p366, %p367
      %p369 = scmp.ne.s32.totalorder %s357, %s358
      %p370 = scmp.eq.s32.totalorder %s33, 1
      %p371 = por %p369, %p370
      %p373 = scmp.ne.s32.totalorder %s358, %s372
      %p374 = scmp.eq.s32.totalorder %s33, 0
      %p375 = por %p373, %p374
      %s377 = sadd.s32 %s376, 1
      %p380 = scmp.eq.s32.totalorder %s27, 1
      %p381 = scmp.ne.s32.totalorder %s376, %s378
      %p382 = scmp.eq.s32.totalorder %s27, 0
      %p383 = por %p381, %p382
      %p384 = scmp.ne.s32.totalorder %s376, %s378
      %p385 = scmp.eq.s32.totalorder %s32, 1
      %p386 = por %p384, %p385
      %p387 = scmp.ne.s32.totalorder %s378, %s379
      %p388 = scmp.eq.s32.totalorder %s32, 0
      %p389 = por %p387, %p388
      %p390 = scmp.ne.s32.totalorder %s378, %s379
      %p391 = scmp.eq.s32.totalorder %s33, 1
      %p392 = por %p390, %p391
      %p394 = scmp.ne.s32.totalorder %s379, %s393
      %p395 = scmp.eq.s32.totalorder %s33, 0
      %p396 = por %p394, %p395
      %s398 = sadd.s32 %s397, 1
      %p401 = scmp.eq.s32.totalorder %s27, 1
      %p402 = scmp.ne.s32.totalorder %s397, %s399
      %p403 = scmp.eq.s32.totalorder %s27, 0
      %p404 = por %p402, %p403
      %p405 = scmp.ne.s32.totalorder %s397, %s399
      %p406 = scmp.eq.s32.totalorder %s32, 1
      %p407 = por %p405, %p406
      %p408 = scmp.ne.s32.totalorder %s399, %s400
      %p409 = scmp.eq.s32.totalorder %s32, 0
      %p410 = por %p408, %p409
      %p411 = scmp.ne.s32.totalorder %s399, %s400
      %p412 = scmp.eq.s32.totalorder %s33, 1
      %p413 = por %p411, %p412
      %p415 = scmp.ne.s32.totalorder %s400, %s414
      %p416 = scmp.eq.s32.totalorder %s33, 0
      %p417 = por %p415, %p416
      %s418 = ssub.s32 %s27, %s34
      %p419 = scmp.eq.s32.totalorder %s418, 0
      %s421 = sadd.s32 %s420, 1
      %s422 = scalar_select %p419, %s420, %s421
      %p425 = pneg %p419
      %p426 = scmp.eq.s32.totalorder %s27, 1
      %p427 = por %p425, %p426
      %p428 = scmp.ne.s32.totalorder %s420, %s423
      %p429 = scmp.eq.s32.totalorder %s27, 0
      %p430 = por %p428, %p429
      %p431 = scmp.ne.s32.totalorder %s420, %s423
      %p432 = scmp.eq.s32.totalorder %s32, 1
      %p433 = por %p431, %p432
      %p434 = scmp.ne.s32.totalorder %s423, %s424
      %p435 = scmp.eq.s32.totalorder %s32, 0
      %p436 = por %p434, %p435
      %p437 = scmp.ne.s32.totalorder %s423, %s424
      %p438 = scmp.eq.s32.totalorder %s33, 1
      %p439 = por %p437, %p438
      %p441 = scmp.ne.s32.totalorder %s424, %s440
      %p442 = scmp.eq.s32.totalorder %s33, 0
      %p443 = por %p441, %p442
      %p444 = scmp.le.s32.totalorder 1, %s27
      %p445 = scmp.lt.s32.totalorder %s27, 3
      %p446 = pnand %p444, %p445
      %p447 = pneg %p446
      // Predicated region
      $region9: #{tpu_custom_call.1} parent=5 // pred_check
        _
      $region10: #{tpu_custom_call.1} parent=5 // pred_check_branch
        %449 = sbr.rel (%p446) target = $region12
      $region11: #{tpu_custom_call.1} parent=5 // pred_region
        %s450 = ssub.s32 %s27, 1
        // Predicated region
        $region13: #{tpu_custom_call.1} parent=11 // pred_check
          %p451 = pneg %p48
        $region14: #{tpu_custom_call.1} parent=11 // pred_check_branch
          %453 = sbr.rel (%p451) target = $region16
        $region15: #{tpu_custom_call.1} parent=11 // pred_region
          _
        $region16: #{tpu_custom_call.1} parent=11 // pred_fallthru
          _
        // Predicated region
        $region17: #{tpu_custom_call.1} parent=11 // pred_check
          %p454 = pneg %p95
        $region18: #{tpu_custom_call.1} parent=11 // pred_check_branch
          %456 = sbr.rel (%p454) target = $region20
        $region19: #{tpu_custom_call.1} parent=11 // pred_region
          _
        $region20: #{tpu_custom_call.1} parent=11 // pred_fallthru
          _
        // Predicated region
        $region21: #{tpu_custom_call.1} parent=11 // pred_check
          %p457 = pneg %p116
        $region22: #{tpu_custom_call.1} parent=11 // pred_check_branch
          %459 = sbr.rel (%p457) target = $region24
        $region23: #{tpu_custom_call.1} parent=11 // pred_region
          _
        $region24: #{tpu_custom_call.1} parent=11 // pred_fallthru
          _
        // Predicated region
        $region25: #{tpu_custom_call.1} parent=11 // pred_check
          %p460 = pneg %p137
        $region26: #{tpu_custom_call.1} parent=11 // pred_check_branch
          %462 = sbr.rel (%p460) target = $region28
        $region27: #{tpu_custom_call.1} parent=11 // pred_region
          _
        $region28: #{tpu_custom_call.1} parent=11 // pred_fallthru
          _
        // Predicated region
        $region29: #{tpu_custom_call.1} parent=11 // pred_check
          %p463 = pneg %p158
        $region30: #{tpu_custom_call.1} parent=11 // pred_check_branch
          %465 = sbr.rel (%p463) target = $region32
        $region31: #{tpu_custom_call.1} parent=11 // pred_region
          _
        $region32: #{tpu_custom_call.1} parent=11 // pred_fallthru
          _
        // Predicated region
        $region33: #{tpu_custom_call.1} parent=11 // pred_check
          %p466 = pneg %p179
        $region34: #{tpu_custom_call.1} parent=11 // pred_check_branch
          %468 = sbr.rel (%p466) target = $region36
        $region35: #{tpu_custom_call.1} parent=11 // pred_region
          _
        $region36: #{tpu_custom_call.1} parent=11 // pred_fallthru
          _
        // Predicated region
        $region37: #{tpu_custom_call.1} parent=11 // pred_check
          %p469 = pneg %p200
        $region38: #{tpu_custom_call.1} parent=11 // pred_check_branch
          %471 = sbr.rel (%p469) target = $region40
        $region39: #{tpu_custom_call.1} parent=11 // pred_region
          _
        $region40: #{tpu_custom_call.1} parent=11 // pred_fallthru
          _
        // Predicated region
        $region41: #{tpu_custom_call.1} parent=11 // pred_check
          %p472 = pneg %p221
        $region42: #{tpu_custom_call.1} parent=11 // pred_check_branch
          %474 = sbr.rel (%p472) target = $region44
        $region43: #{tpu_custom_call.1} parent=11 // pred_region
          _
        $region44: #{tpu_custom_call.1} parent=11 // pred_fallthru
          _
        // Predicated region
        $region45: #{tpu_custom_call.1} parent=11 // pred_check
          %p475 = pneg %p242
        $region46: #{tpu_custom_call.1} parent=11 // pred_check_branch
          %477 = sbr.rel (%p475) target = $region48
        $region47: #{tpu_custom_call.1} parent=11 // pred_region
          _
        $region48: #{tpu_custom_call.1} parent=11 // pred_fallthru
          _
        // Predicated region
        $region49: #{tpu_custom_call.1} parent=11 // pred_check
          %p478 = pneg %p263
        $region50: #{tpu_custom_call.1} parent=11 // pred_check_branch
          %480 = sbr.rel (%p478) target = $region52
        $region51: #{tpu_custom_call.1} parent=11 // pred_region
          _
        $region52: #{tpu_custom_call.1} parent=11 // pred_fallthru
          _
        // Predicated region
        $region53: #{tpu_custom_call.1} parent=11 // pred_check
          %p481 = pneg %p284
        $region54: #{tpu_custom_call.1} parent=11 // pred_check_branch
          %483 = sbr.rel (%p481) target = $region56
        $region55: #{tpu_custom_call.1} parent=11 // pred_region
          _
        $region56: #{tpu_custom_call.1} parent=11 // pred_fallthru
          _
        // Predicated region
        $region57: #{tpu_custom_call.1} parent=11 // pred_check
          %p484 = pneg %p305
        $region58: #{tpu_custom_call.1} parent=11 // pred_check_branch
          %486 = sbr.rel (%p484) target = $region60
        $region59: #{tpu_custom_call.1} parent=11 // pred_region
          _
        $region60: #{tpu_custom_call.1} parent=11 // pred_fallthru
          _
        // Predicated region
        $region61: #{tpu_custom_call.1} parent=11 // pred_check
          %p487 = pneg %p326
        $region62: #{tpu_custom_call.1} parent=11 // pred_check_branch
          %489 = sbr.rel (%p487) target = $region64
        $region63: #{tpu_custom_call.1} parent=11 // pred_region
          _
        $region64: #{tpu_custom_call.1} parent=11 // pred_fallthru
          _
        // Predicated region
        $region65: #{tpu_custom_call.1} parent=11 // pred_check
          %p490 = pneg %p347
        $region66: #{tpu_custom_call.1} parent=11 // pred_check_branch
          %492 = sbr.rel (%p490) target = $region68
        $region67: #{tpu_custom_call.1} parent=11 // pred_region
          _
        $region68: #{tpu_custom_call.1} parent=11 // pred_fallthru
          _
        // Predicated region
        $region69: #{tpu_custom_call.1} parent=11 // pred_check
          %p493 = pneg %p368
        $region70: #{tpu_custom_call.1} parent=11 // pred_check_branch
          %495 = sbr.rel (%p493) target = $region72
        $region71: #{tpu_custom_call.1} parent=11 // pred_region
          _
        $region72: #{tpu_custom_call.1} parent=11 // pred_fallthru
          _
        // Predicated region
        $region73: #{tpu_custom_call.1} parent=11 // pred_check
          %p496 = pneg %p389
        $region74: #{tpu_custom_call.1} parent=11 // pred_check_branch
          %498 = sbr.rel (%p496) target = $region76
        $region75: #{tpu_custom_call.1} parent=11 // pred_region
          _
        $region76: #{tpu_custom_call.1} parent=11 // pred_fallthru
          _
        // Predicated region
        $region77: #{tpu_custom_call.1} parent=11 // pred_check
          %p499 = pneg %p410
        $region78: #{tpu_custom_call.1} parent=11 // pred_check_branch
          %501 = sbr.rel (%p499) target = $region80
        $region79: #{tpu_custom_call.1} parent=11 // pred_region
          _
        $region80: #{tpu_custom_call.1} parent=11 // pred_fallthru
          _
      $region12: #{tpu_custom_call.1} parent=5 // pred_fallthru
        _
      %p502 = scmp.lt.s32.totalorder %s27, 2
      // Predicated region
      $region81: #{tpu_custom_call.1} parent=5 // pred_check
        %p503 = pneg %p502
      $region82: #{tpu_custom_call.1} parent=5 // pred_check_branch
        %505 = sbr.rel (%p503) target = $region84
      $region83: #{tpu_custom_call.1} parent=5 // pred_region
        // Predicated region
        $region85: #{tpu_custom_call.1} parent=83 // pred_check
          %p506 = pneg %p68
        $region86: #{tpu_custom_call.1} parent=83 // pred_check_branch
          %508 = sbr.rel (%p506) target = $region88
        $region87: #{tpu_custom_call.1} parent=83 // pred_region
          %p509 = scmp.lt.s32.totalorder %s27, 1
          %s510 = scalar_select %p509, %s27, 1
          %s511 = smul.addr %s510, 8
          %s512 = scalar_lea.vmem %s1, %s511
        $region88: #{tpu_custom_call.1} parent=83 // pred_fallthru
          _
      $region84: #{tpu_custom_call.1} parent=5 // pred_fallthru
        _
      %p513 = scmp.le.s32.totalorder 1, %s27
      %p514 = scmp.lt.s32.totalorder %s27, 3
      %p515 = pnand %p513, %p514
      %p516 = pneg %p515
      // Predicated region
      $region89: #{tpu_custom_call.1} parent=5 // pred_check
        _
      $region90: #{tpu_custom_call.1} parent=5 // pred_check_branch
        %518 = sbr.rel (%p515) target = $region92
      $region91: #{tpu_custom_call.1} parent=5 // pred_region
        %s519 = ssub.s32 %s27, 1
        %p520 = pneg %p48
        %p521 = pneg %p45
        %p522 = scmp.lt.s32.totalorder %s32, 1
        %s523 = scalar_select %p522, %s32, 1
        %s524 = smul.addr %s523, 8
        %s525 = scalar_lea.vmem %s1, %s524
        %p526 = pneg %p74
        %p527 = pneg %p71
        %p528 = pneg %p95
        %p529 = pneg %p92
        %p530 = pneg %p116
        %p531 = pneg %p113
        %p532 = pneg %p137
        %p533 = pneg %p134
        %p534 = pneg %p158
        %p535 = pneg %p155
        %p536 = pneg %p179
        %p537 = pneg %p176
        %p538 = pneg %p200
        %p539 = pneg %p197
        %p540 = pneg %p221
        %p541 = pneg %p218
        %p542 = pneg %p242
        %p543 = pneg %p239
        %p544 = pneg %p263
        %p545 = pneg %p260
        %p546 = pneg %p284
        %p547 = pneg %p281
        %p548 = pneg %p305
        %p549 = pneg %p302
        %p550 = pneg %p326
        %p551 = pneg %p323
        %p552 = pneg %p347
        %p553 = pneg %p344
        %p554 = pneg %p368
        %p555 = pneg %p365
        %p556 = pneg %p389
        %p557 = pneg %p386
        %p558 = pneg %p410
        %p559 = pneg %p407
        %p560 = pneg %p436
        %p561 = pneg %p433
        %s562 = sand.u32 %s423, 1
        %s563 = scalar_lea.sflag [#allocation3], %s562
        %s564 = sand.u32 %s423, 1
        %s565 = smul.addr %s564, 24
        %s566 = scalar_lea.vmem [#allocation2], %s565
        %p567 = scmp.lt.s32.totalorder %s32, 1
        %s568 = scalar_select %p567, %s32, 1
        %s569 = smul.addr %s568, 8
        %s570 = scalar_lea.vmem %s1, %s569
        %v571 = vld [vmem:[%s0] sm:$0x1]
        %v572 = vld [vmem:[%s570] sm:$0xff]
        %vm573 = vcmp.ge.s32.totalorder %v571, 1
        %v574 = vsel %vm573, 1.0, 0.0
        %vm575 = vcmp.ge.s32.totalorder %v571, 2
        %v576 = vsel %vm575, 1.0, 0.0
        %vm577 = vcmp.ge.s32.totalorder %v571, 4
        %v578 = vsel %vm577, 1.0, 0.0
        %vm579 = vcmp.ge.s32.totalorder %v571, 8
        %v580 = vsel %vm579, 1.0, 0.0
        %581 = vrot.lane.b32.xlu0 %v572, 2
        %v582 = vpop.permute.xlu0 %581
        %v584 = vlaneseq
        %v585 = vshrl.u32 %v584, 7
        %v586 = vsub.s32 0, %v585
        %v587 = vrot.slane %v576, %v586
        %v589 = vmul.f32 %v582, %v587
        %590 = vrot.lane.b32.xlu0 %v572, 1
        %v591 = vpop.permute.xlu0 %590
        %v593 = vlaneseq
        %v594 = vshrl.u32 %v593, 7
        %v595 = vsub.s32 0, %v594
        %v596 = vrot.slane %v574, %v595
        %v598 = vmul.f32 %v591, %v596
        %v599 = vld [vmem:[%s2] sm:$0xff]
        %v600 = vld [vmem:[%s2 + $0x8] sm:$0xff]
        %v601 = vld [vmem:[%s3] sm:$0xff]
        %v602 = vld [vmem:[%s3 + $0x8] sm:$0xff]
        %604 = vset.pattern.permute.xlu0 0
        %605 = vperm.xlu0 %604, %v601
        %v606 = vpop.permute.xlu0 %605
        %609 = vset.pattern.permute.xlu0 0
        %610 = vperm.xlu0 %609, %v602
        %v611 = vpop.permute.xlu0 %610
        %vm613 = vcmask 195584
        %v615 = vsel %vm613, %v599, 0
        %v618 = vsel %vm613, %v600, 0
        %620 = vmatprep.subr.mxu0 0.0
        %621 = vmatpush1.msra.mxu0 0.0
        %622 = vmatprep.subr.mxu0 0.0
        %623 = vmatpush1.msra.mxu0 0.0
        %624 = vmatprep.subr.mxu0 0.0
        %625 = vmatpush1.msra.mxu0 0.0
        %626 = vmatprep.subr.mxu0 0.0
        %627 = vmatpush1.msra.mxu0 0.0
        %628 = vmatprep.subr.mxu0 0.0
        %629 = vmatpush1.msra.mxu0 0.0
        %630 = vmatprep.subr.mxu0 0.0
        %631 = vmatpush1.msra.mxu0 0.0
        %632 = vmatprep.subr.mxu0 0.0
        %633 = vmatpush1.msra.mxu0 0.0
        %634 = vmatprep.subr.mxu0 0.0
        %635 = vmatpush1.msra.mxu0 0.0
        %636 = vmatprep.subr.mxu0 0.0
        %637 = vmatpush1.msra.mxu0 0.0
        %638 = vmatprep.subr.mxu0 0.0
        %639 = vmatpush1.msra.mxu0 0.0
        %640 = vmatprep.subr.mxu0 0.0
        %641 = vmatpush1.msra.mxu0 0.0
        %642 = vmatprep.subr.mxu0 0.0
        %643 = vmatpush1.msra.mxu0 0.0
        %644 = vmatprep.subr.mxu0 0.0
        %645 = vmatpush1.msra.mxu0 0.0
        %646 = vmatprep.subr.mxu0 0.0
        %647 = vmatpush1.msra.mxu0 %v572
        %648 = vmatprep.subr.mxu0 0.0
        %649 = vmatpush1.msra.mxu0 %v598
        %650 = vmatprep.subr.mxu0 0.0
        %651 = vmatpush1.msra.mxu0 %v589
        %652 = vmatprep.subr.mxu0 0.0
        %653 = vmatpush2.msra.mxu0 0.0
        %654 = vmatprep.subr.mxu0 0.0
        %655 = vmatpush2.msra.mxu0 0.0
        %656 = vmatprep.subr.mxu0 0.0
        %657 = vmatpush2.msra.mxu0 0.0
        %658 = vmatprep.subr.mxu0 0.0
        %659 = vmatpush2.msra.mxu0 0.0
        %660 = vmatprep.subr.mxu0 0.0
        %661 = vmatpush2.msra.mxu0 0.0
        %662 = vmatprep.subr.mxu0 0.0
        %663 = vmatpush2.msra.mxu0 0.0
        %664 = vmatprep.subr.mxu0 0.0
        %665 = vmatpush2.msra.mxu0 0.0
        %666 = vmatprep.subr.mxu0 0.0
        %667 = vmatpush2.msra.mxu0 0.0
        %668 = vmatprep.subr.mxu0 0.0
        %669 = vmatpush2.msra.mxu0 0.0
        %670 = vmatprep.subr.mxu0 0.0
        %671 = vmatpush2.msra.mxu0 0.0
        %672 = vmatprep.subr.mxu0 0.0
        %673 = vmatpush2.msra.mxu0 0.0
        %674 = vmatprep.subr.mxu0 0.0
        %675 = vmatpush2.msra.mxu0 0.0
        %676 = vmatprep.subr.mxu0 0.0
        %677 = vmatpush2.msra.mxu0 0.0
        %678 = vmatprep.subr.mxu0 0.0
        %679 = vmatpush2.msra.mxu0 0.0
        %680 = vmatprep.subr.mxu0 0.0
        %681 = vmatpush2.msra.mxu0 0.0
        %682 = vmatprep.subr.mxu0 0.0
        %683 = vmatpush2.msra.mxu0 0.0
        %684 = vmatprep.mubr.f32.mxu0 0.0
        %685 = vmatmul.mubr.f32.gmra.mxu0 %v615
        %v686 = vpop.f32.mrf.mxu0
        %v687 = vadd.f32 %v606, %v686
        %v688 = vpop.f32.mrf.mxu0
        %689 = vmatprep.mubr.f32.mxu0 0.0
        %690 = vmatmul.mubr.f32.gmra.mxu0 %v618
        %v691 = vpop.f32.mrf.mxu0
        %v692 = vadd.f32 %v611, %v691
        %v693 = vpop.f32.mrf.mxu0
        %694 = vdwg.mxu0
        %v695 = vmax.f32 %v687, 0.0
        %v696 = vmax.f32 %v692, 0.0
        %697 = vrot.lane.b32.xlu0 %v695, 2
        %v698 = vpop.permute.xlu0 %697
        %699 = vrot.lane.b32.xlu0 %v696, 2
        %v700 = vpop.permute.xlu0 %699
        %v701 = vmul.f32 %v698, %v587
        %v702 = vmul.f32 %v700, %v587
        %703 = vrot.lane.b32.xlu0 %v695, 1
        %v704 = vpop.permute.xlu0 %703
        %705 = vrot.lane.b32.xlu0 %v696, 1
        %v706 = vpop.permute.xlu0 %705
        %v707 = vmul.f32 %v704, %v596
        %v708 = vmul.f32 %v706, %v596
        %v709 = vld [vmem:[%s4] sm:$0xff]
        %v710 = vld [vmem:[%s4 + $0x8] sm:$0xff]
        %v711 = vld [vmem:[%s5] sm:$0xff]
        %v712 = vld [vmem:[%s5 + $0x8] sm:$0xff]
        %714 = vset.pattern.permute.xlu0 0
        %715 = vperm.xlu0 %714, %v711
        %v716 = vpop.permute.xlu0 %715
        %719 = vset.pattern.permute.xlu0 0
        %720 = vperm.xlu0 %719, %v712
        %v721 = vpop.permute.xlu0 %720
        %vm723 = vcmask 392192
        %v725 = vsel %vm723, %v709, 0
        %v728 = vsel %vm723, %v710, 0
        %730 = vmatprep.subr.mxu0 0.0
        %731 = vmatpush1.msra.mxu0 0.0
        %732 = vmatprep.subr.mxu0 0.0
        %733 = vmatpush1.msra.mxu0 0.0
        %734 = vmatprep.subr.mxu0 0.0
        %735 = vmatpush1.msra.mxu0 0.0
        %736 = vmatprep.subr.mxu0 0.0
        %737 = vmatpush1.msra.mxu0 0.0
        %738 = vmatprep.subr.mxu0 0.0
        %739 = vmatpush1.msra.mxu0 0.0
        %740 = vmatprep.subr.mxu0 0.0
        %741 = vmatpush1.msra.mxu0 0.0
        %742 = vmatprep.subr.mxu0 0.0
        %743 = vmatpush1.msra.mxu0 0.0
        %744 = vmatprep.subr.mxu0 0.0
        %745 = vmatpush1.msra.mxu0 0.0
        %746 = vmatprep.subr.mxu0 0.0
        %747 = vmatpush1.msra.mxu0 0.0
        %748 = vmatprep.subr.mxu0 0.0
        %749 = vmatpush1.msra.mxu0 0.0
        %750 = vmatprep.subr.mxu0 0.0
        %751 = vmatpush1.msra.mxu0 %v696
        %752 = vmatprep.subr.mxu0 0.0
        %753 = vmatpush1.msra.mxu0 %v695
        %754 = vmatprep.subr.mxu0 0.0
        %755 = vmatpush1.msra.mxu0 %v708
        %756 = vmatprep.subr.mxu0 0.0
        %757 = vmatpush1.msra.mxu0 %v707
        %758 = vmatprep.subr.mxu0 0.0
        %759 = vmatpush1.msra.mxu0 %v702
        %760 = vmatprep.subr.mxu0 0.0
        %761 = vmatpush1.msra.mxu0 %v701
        %762 = vmatprep.subr.mxu0 0.0
        %763 = vmatpush2.msra.mxu0 0.0
        %764 = vmatprep.subr.mxu0 0.0
        %765 = vmatpush2.msra.mxu0 0.0
        %766 = vmatprep.subr.mxu0 0.0
        %767 = vmatpush2.msra.mxu0 0.0
        %768 = vmatprep.subr.mxu0 0.0
        %769 = vmatpush2.msra.mxu0 0.0
        %770 = vmatprep.subr.mxu0 0.0
        %771 = vmatpush2.msra.mxu0 0.0
        %772 = vmatprep.subr.mxu0 0.0
        %773 = vmatpush2.msra.mxu0 0.0
        %774 = vmatprep.subr.mxu0 0.0
        %775 = vmatpush2.msra.mxu0 0.0
        %776 = vmatprep.subr.mxu0 0.0
        %777 = vmatpush2.msra.mxu0 0.0
        %778 = vmatprep.subr.mxu0 0.0
        %779 = vmatpush2.msra.mxu0 0.0
        %780 = vmatprep.subr.mxu0 0.0
        %781 = vmatpush2.msra.mxu0 0.0
        %782 = vmatprep.subr.mxu0 0.0
        %783 = vmatpush2.msra.mxu0 0.0
        %784 = vmatprep.subr.mxu0 0.0
        %785 = vmatpush2.msra.mxu0 0.0
        %786 = vmatprep.subr.mxu0 0.0
        %787 = vmatpush2.msra.mxu0 0.0
        %788 = vmatprep.subr.mxu0 0.0
        %789 = vmatpush2.msra.mxu0 0.0
        %790 = vmatprep.subr.mxu0 0.0
        %791 = vmatpush2.msra.mxu0 0.0
        %792 = vmatprep.subr.mxu0 0.0
        %793 = vmatpush2.msra.mxu0 0.0
        %794 = vmatprep.mubr.f32.mxu0 0.0
        %795 = vmatmul.mubr.f32.gmra.mxu0 %v725
        %v796 = vpop.f32.mrf.mxu0
        %v797 = vadd.f32 %v716, %v796
        %v798 = vpop.f32.mrf.mxu0
        %799 = vmatprep.mubr.f32.mxu0 0.0
        %800 = vmatmul.mubr.f32.gmra.mxu0 %v728
        %v801 = vpop.f32.mrf.mxu0
        %v802 = vadd.f32 %v721, %v801
        %v803 = vpop.f32.mrf.mxu0
        %804 = vdwg.mxu0
        %v805 = vmax.f32 %v797, 0.0
        %v806 = vmax.f32 %v802, 0.0
        %v807 = vld [vmem:[%s6] sm:$0xff]
        %v808 = vld [vmem:[%s6 + $0x8] sm:$0xff]
        %v809 = vld [vmem:[%s7] sm:$0xff]
        %v810 = vld [vmem:[%s7 + $0x8] sm:$0xff]
        %812 = vset.pattern.permute.xlu0 0
        %813 = vperm.xlu0 %812, %v809
        %v814 = vpop.permute.xlu0 %813
        %817 = vset.pattern.permute.xlu0 0
        %818 = vperm.xlu0 %817, %v810
        %v819 = vpop.permute.xlu0 %818
        %vm821 = vcmask 64512
        %v823 = vsel %vm821, %v807, 0
        %v826 = vsel %vm821, %v808, 0
        %828 = vmatprep.subr.mxu0 0.0
        %829 = vmatpush1.msra.mxu0 0.0
        %830 = vmatprep.subr.mxu0 0.0
        %831 = vmatpush1.msra.mxu0 0.0
        %832 = vmatprep.subr.mxu0 0.0
        %833 = vmatpush1.msra.mxu0 0.0
        %834 = vmatprep.subr.mxu0 0.0
        %835 = vmatpush1.msra.mxu0 0.0
        %836 = vmatprep.subr.mxu0 0.0
        %837 = vmatpush1.msra.mxu0 0.0
        %838 = vmatprep.subr.mxu0 0.0
        %839 = vmatpush1.msra.mxu0 0.0
        %840 = vmatprep.subr.mxu0 0.0
        %841 = vmatpush1.msra.mxu0 0.0
        %842 = vmatprep.subr.mxu0 0.0
        %843 = vmatpush1.msra.mxu0 0.0
        %844 = vmatprep.subr.mxu0 0.0
        %845 = vmatpush1.msra.mxu0 0.0
        %846 = vmatprep.subr.mxu0 0.0
        %847 = vmatpush1.msra.mxu0 0.0
        %848 = vmatprep.subr.mxu0 0.0
        %849 = vmatpush1.msra.mxu0 0.0
        %850 = vmatprep.subr.mxu0 0.0
        %851 = vmatpush1.msra.mxu0 0.0
        %852 = vmatprep.subr.mxu0 0.0
        %853 = vmatpush1.msra.mxu0 0.0
        %854 = vmatprep.subr.mxu0 0.0
        %855 = vmatpush1.msra.mxu0 0.0
        %856 = vmatprep.subr.mxu0 0.0
        %857 = vmatpush1.msra.mxu0 0.0
        %858 = vmatprep.subr.mxu0 0.0
        %859 = vmatpush1.msra.mxu0 %v572
        %860 = vmatprep.subr.mxu0 0.0
        %861 = vmatpush2.msra.mxu0 0.0
        %862 = vmatprep.subr.mxu0 0.0
        %863 = vmatpush2.msra.mxu0 0.0
        %864 = vmatprep.subr.mxu0 0.0
        %865 = vmatpush2.msra.mxu0 0.0
        %866 = vmatprep.subr.mxu0 0.0
        %867 = vmatpush2.msra.mxu0 0.0
        %868 = vmatprep.subr.mxu0 0.0
        %869 = vmatpush2.msra.mxu0 0.0
        %870 = vmatprep.subr.mxu0 0.0
        %871 = vmatpush2.msra.mxu0 0.0
        %872 = vmatprep.subr.mxu0 0.0
        %873 = vmatpush2.msra.mxu0 0.0
        %874 = vmatprep.subr.mxu0 0.0
        %875 = vmatpush2.msra.mxu0 0.0
        %876 = vmatprep.subr.mxu0 0.0
        %877 = vmatpush2.msra.mxu0 0.0
        %878 = vmatprep.subr.mxu0 0.0
        %879 = vmatpush2.msra.mxu0 0.0
        %880 = vmatprep.subr.mxu0 0.0
        %881 = vmatpush2.msra.mxu0 0.0
        %882 = vmatprep.subr.mxu0 0.0
        %883 = vmatpush2.msra.mxu0 0.0
        %884 = vmatprep.subr.mxu0 0.0
        %885 = vmatpush2.msra.mxu0 0.0
        %886 = vmatprep.subr.mxu0 0.0
        %887 = vmatpush2.msra.mxu0 0.0
        %888 = vmatprep.subr.mxu0 0.0
        %889 = vmatpush2.msra.mxu0 0.0
        %890 = vmatprep.subr.mxu0 0.0
        %891 = vmatpush2.msra.mxu0 0.0
        %892 = vmatprep.mubr.f32.mxu0 0.0
        %893 = vmatmul.mubr.f32.gmra.mxu0 %v823
        %v894 = vpop.f32.mrf.mxu0
        %v895 = vadd.f32 %v814, %v894
        %v896 = vpop.f32.mrf.mxu0
        %897 = vmatprep.mubr.f32.mxu0 0.0
        %898 = vmatmul.mubr.f32.gmra.mxu0 %v826
        %v899 = vpop.f32.mrf.mxu0
        %v900 = vadd.f32 %v819, %v899
        %v901 = vpop.f32.mrf.mxu0
        %902 = vdwg.mxu0
        %v903 = vadd.f32 %v805, %v895
        %v904 = vadd.f32 %v806, %v900
        %v905 = vmax.f32 %v903, 0.0
        %v906 = vmax.f32 %v904, 0.0
        %907 = vrot.lane.b32.xlu0 %v905, 4
        %v908 = vpop.permute.xlu0 %907
        %909 = vrot.lane.b32.xlu0 %v906, 4
        %v910 = vpop.permute.xlu0 %909
        %v912 = vlaneseq
        %v913 = vshrl.u32 %v912, 7
        %v914 = vsub.s32 0, %v913
        %v915 = vrot.slane %v578, %v914
        %v917 = vmul.f32 %v908, %v915
        %v918 = vmul.f32 %v910, %v915
        %919 = vrot.lane.b32.xlu0 %v905, 2
        %v920 = vpop.permute.xlu0 %919
        %921 = vrot.lane.b32.xlu0 %v906, 2
        %v922 = vpop.permute.xlu0 %921
        %v923 = vmul.f32 %v920, %v587
        %v924 = vmul.f32 %v922, %v587
        %v925 = vld [vmem:[%s8] sm:$0xff]
        %v926 = vld [vmem:[%s8 + $0x8] sm:$0xff]
        %v927 = vld [vmem:[%s9] sm:$0xff]
        %v928 = vld [vmem:[%s9 + $0x8] sm:$0xff]
        %930 = vset.pattern.permute.xlu0 0
        %931 = vperm.xlu0 %930, %v927
        %v932 = vpop.permute.xlu0 %931
        %935 = vset.pattern.permute.xlu0 0
        %936 = vperm.xlu0 %935, %v928
        %v937 = vpop.permute.xlu0 %936
        %v940 = vsel %vm723, %v925, 0
        %v943 = vsel %vm723, %v926, 0
        %945 = vmatprep.subr.mxu0 0.0
        %946 = vmatpush1.msra.mxu0 0.0
        %947 = vmatprep.subr.mxu0 0.0
        %948 = vmatpush1.msra.mxu0 0.0
        %949 = vmatprep.subr.mxu0 0.0
        %950 = vmatpush1.msra.mxu0 0.0
        %951 = vmatprep.subr.mxu0 0.0
        %952 = vmatpush1.msra.mxu0 0.0
        %953 = vmatprep.subr.mxu0 0.0
        %954 = vmatpush1.msra.mxu0 0.0
        %955 = vmatprep.subr.mxu0 0.0
        %956 = vmatpush1.msra.mxu0 0.0
        %957 = vmatprep.subr.mxu0 0.0
        %958 = vmatpush1.msra.mxu0 0.0
        %959 = vmatprep.subr.mxu0 0.0
        %960 = vmatpush1.msra.mxu0 0.0
        %961 = vmatprep.subr.mxu0 0.0
        %962 = vmatpush1.msra.mxu0 0.0
        %963 = vmatprep.subr.mxu0 0.0
        %964 = vmatpush1.msra.mxu0 0.0
        %965 = vmatprep.subr.mxu0 0.0
        %966 = vmatpush1.msra.mxu0 %v906
        %967 = vmatprep.subr.mxu0 0.0
        %968 = vmatpush1.msra.mxu0 %v905
        %969 = vmatprep.subr.mxu0 0.0
        %970 = vmatpush1.msra.mxu0 %v924
        %971 = vmatprep.subr.mxu0 0.0
        %972 = vmatpush1.msra.mxu0 %v923
        %973 = vmatprep.subr.mxu0 0.0
        %974 = vmatpush1.msra.mxu0 %v918
        %975 = vmatprep.subr.mxu0 0.0
        %976 = vmatpush1.msra.mxu0 %v917
        %977 = vmatprep.subr.mxu0 0.0
        %978 = vmatpush2.msra.mxu0 0.0
        %979 = vmatprep.subr.mxu0 0.0
        %980 = vmatpush2.msra.mxu0 0.0
        %981 = vmatprep.subr.mxu0 0.0
        %982 = vmatpush2.msra.mxu0 0.0
        %983 = vmatprep.subr.mxu0 0.0
        %984 = vmatpush2.msra.mxu0 0.0
        %985 = vmatprep.subr.mxu0 0.0
        %986 = vmatpush2.msra.mxu0 0.0
        %987 = vmatprep.subr.mxu0 0.0
        %988 = vmatpush2.msra.mxu0 0.0
        %989 = vmatprep.subr.mxu0 0.0
        %990 = vmatpush2.msra.mxu0 0.0
        %991 = vmatprep.subr.mxu0 0.0
        %992 = vmatpush2.msra.mxu0 0.0
        %993 = vmatprep.subr.mxu0 0.0
        %994 = vmatpush2.msra.mxu0 0.0
        %995 = vmatprep.subr.mxu0 0.0
        %996 = vmatpush2.msra.mxu0 0.0
        %997 = vmatprep.subr.mxu0 0.0
        %998 = vmatpush2.msra.mxu0 0.0
        %999 = vmatprep.subr.mxu0 0.0
        %1000 = vmatpush2.msra.mxu0 0.0
        %1001 = vmatprep.subr.mxu0 0.0
        %1002 = vmatpush2.msra.mxu0 0.0
        %1003 = vmatprep.subr.mxu0 0.0
        %1004 = vmatpush2.msra.mxu0 0.0
        %1005 = vmatprep.subr.mxu0 0.0
        %1006 = vmatpush2.msra.mxu0 0.0
        %1007 = vmatprep.subr.mxu0 0.0
        %1008 = vmatpush2.msra.mxu0 0.0
        %1009 = vmatprep.mubr.f32.mxu0 0.0
        %1010 = vmatmul.mubr.f32.gmra.mxu0 %v940
        %v1011 = vpop.f32.mrf.mxu0
        %v1012 = vadd.f32 %v932, %v1011
        %v1013 = vpop.f32.mrf.mxu0
        %1014 = vmatprep.mubr.f32.mxu0 0.0
        %1015 = vmatmul.mubr.f32.gmra.mxu0 %v943
        %v1016 = vpop.f32.mrf.mxu0
        %v1017 = vadd.f32 %v937, %v1016
        %v1018 = vpop.f32.mrf.mxu0
        %1019 = vdwg.mxu0
        %v1020 = vmax.f32 %v1012, 0.0
        %v1021 = vmax.f32 %v1017, 0.0
        %1022 = vrot.lane.b32.xlu0 %v1020, 4
        %v1023 = vpop.permute.xlu0 %1022
        %1024 = vrot.lane.b32.xlu0 %v1021, 4
        %v1025 = vpop.permute.xlu0 %1024
        %v1026 = vmul.f32 %v1023, %v915
        %v1027 = vmul.f32 %v1025, %v915
        %1028 = vrot.lane.b32.xlu0 %v1020, 2
        %v1029 = vpop.permute.xlu0 %1028
        %1030 = vrot.lane.b32.xlu0 %v1021, 2
        %v1031 = vpop.permute.xlu0 %1030
        %v1032 = vmul.f32 %v1029, %v587
        %v1033 = vmul.f32 %v1031, %v587
        %v1034 = vld [vmem:[%s10] sm:$0xff]
        %v1035 = vld [vmem:[%s10 + $0x8] sm:$0xff]
        %v1036 = vld [vmem:[%s11] sm:$0xff]
        %v1037 = vld [vmem:[%s11 + $0x8] sm:$0xff]
        %1039 = vset.pattern.permute.xlu0 0
        %1040 = vperm.xlu0 %1039, %v1036
        %v1041 = vpop.permute.xlu0 %1040
        %1044 = vset.pattern.permute.xlu0 0
        %1045 = vperm.xlu0 %1044, %v1037
        %v1046 = vpop.permute.xlu0 %1045
        %v1049 = vsel %vm723, %v1034, 0
        %v1052 = vsel %vm723, %v1035, 0
        %1054 = vmatprep.subr.mxu0 0.0
        %1055 = vmatpush1.msra.mxu0 0.0
        %1056 = vmatprep.subr.mxu0 0.0
        %1057 = vmatpush1.msra.mxu0 0.0
        %1058 = vmatprep.subr.mxu0 0.0
        %1059 = vmatpush1.msra.mxu0 0.0
        %1060 = vmatprep.subr.mxu0 0.0
        %1061 = vmatpush1.msra.mxu0 0.0
        %1062 = vmatprep.subr.mxu0 0.0
        %1063 = vmatpush1.msra.mxu0 0.0
        %1064 = vmatprep.subr.mxu0 0.0
        %1065 = vmatpush1.msra.mxu0 0.0
        %1066 = vmatprep.subr.mxu0 0.0
        %1067 = vmatpush1.msra.mxu0 0.0
        %1068 = vmatprep.subr.mxu0 0.0
        %1069 = vmatpush1.msra.mxu0 0.0
        %1070 = vmatprep.subr.mxu0 0.0
        %1071 = vmatpush1.msra.mxu0 0.0
        %1072 = vmatprep.subr.mxu0 0.0
        %1073 = vmatpush1.msra.mxu0 0.0
        %1074 = vmatprep.subr.mxu0 0.0
        %1075 = vmatpush1.msra.mxu0 %v1021
        %1076 = vmatprep.subr.mxu0 0.0
        %1077 = vmatpush1.msra.mxu0 %v1020
        %1078 = vmatprep.subr.mxu0 0.0
        %1079 = vmatpush1.msra.mxu0 %v1033
        %1080 = vmatprep.subr.mxu0 0.0
        %1081 = vmatpush1.msra.mxu0 %v1032
        %1082 = vmatprep.subr.mxu0 0.0
        %1083 = vmatpush1.msra.mxu0 %v1027
        %1084 = vmatprep.subr.mxu0 0.0
        %1085 = vmatpush1.msra.mxu0 %v1026
        %1086 = vmatprep.subr.mxu0 0.0
        %1087 = vmatpush2.msra.mxu0 0.0
        %1088 = vmatprep.subr.mxu0 0.0
        %1089 = vmatpush2.msra.mxu0 0.0
        %1090 = vmatprep.subr.mxu0 0.0
        %1091 = vmatpush2.msra.mxu0 0.0
        %1092 = vmatprep.subr.mxu0 0.0
        %1093 = vmatpush2.msra.mxu0 0.0
        %1094 = vmatprep.subr.mxu0 0.0
        %1095 = vmatpush2.msra.mxu0 0.0
        %1096 = vmatprep.subr.mxu0 0.0
        %1097 = vmatpush2.msra.mxu0 0.0
        %1098 = vmatprep.subr.mxu0 0.0
        %1099 = vmatpush2.msra.mxu0 0.0
        %1100 = vmatprep.subr.mxu0 0.0
        %1101 = vmatpush2.msra.mxu0 0.0
        %1102 = vmatprep.subr.mxu0 0.0
        %1103 = vmatpush2.msra.mxu0 0.0
        %1104 = vmatprep.subr.mxu0 0.0
        %1105 = vmatpush2.msra.mxu0 0.0
        %1106 = vmatprep.subr.mxu0 0.0
        %1107 = vmatpush2.msra.mxu0 0.0
        %1108 = vmatprep.subr.mxu0 0.0
        %1109 = vmatpush2.msra.mxu0 0.0
        %1110 = vmatprep.subr.mxu0 0.0
        %1111 = vmatpush2.msra.mxu0 0.0
        %1112 = vmatprep.subr.mxu0 0.0
        %1113 = vmatpush2.msra.mxu0 0.0
        %1114 = vmatprep.subr.mxu0 0.0
        %1115 = vmatpush2.msra.mxu0 0.0
        %1116 = vmatprep.subr.mxu0 0.0
        %1117 = vmatpush2.msra.mxu0 0.0
        %1118 = vmatprep.mubr.f32.mxu0 0.0
        %1119 = vmatmul.mubr.f32.gmra.mxu0 %v1049
        %v1120 = vpop.f32.mrf.mxu0
        %v1121 = vadd.f32 %v1041, %v1120
        %v1122 = vpop.f32.mrf.mxu0
        %1123 = vmatprep.mubr.f32.mxu0 0.0
        %1124 = vmatmul.mubr.f32.gmra.mxu0 %v1052
        %v1125 = vpop.f32.mrf.mxu0
        %v1126 = vadd.f32 %v1046, %v1125
        %v1127 = vpop.f32.mrf.mxu0
        %1128 = vdwg.mxu0
        %v1129 = vmax.f32 %v1121, 0.0
        %v1130 = vmax.f32 %v1126, 0.0
        %v1131 = vadd.f32 %v1129, %v905
        %v1132 = vadd.f32 %v1130, %v906
        %v1133 = vmax.f32 %v1131, 0.0
        %v1134 = vmax.f32 %v1132, 0.0
        %1135 = vrot.lane.b32.xlu0 %v1133, 8
        %v1136 = vpop.permute.xlu0 %1135
        %1137 = vrot.lane.b32.xlu0 %v1134, 8
        %v1138 = vpop.permute.xlu0 %1137
        %v1140 = vlaneseq
        %v1141 = vshrl.u32 %v1140, 7
        %v1142 = vsub.s32 0, %v1141
        %v1143 = vrot.slane %v580, %v1142
        %v1145 = vmul.f32 %v1136, %v1143
        %v1146 = vmul.f32 %v1138, %v1143
        %1147 = vrot.lane.b32.xlu0 %v1133, 4
        %v1148 = vpop.permute.xlu0 %1147
        %1149 = vrot.lane.b32.xlu0 %v1134, 4
        %v1150 = vpop.permute.xlu0 %1149
        %v1151 = vmul.f32 %v1148, %v915
        %v1152 = vmul.f32 %v1150, %v915
        %v1153 = vld [vmem:[%s12] sm:$0xff]
        %v1154 = vld [vmem:[%s12 + $0x8] sm:$0xff]
        %v1155 = vld [vmem:[%s12 + $0x10] sm:$0xff]
        %v1156 = vld [vmem:[%s13] sm:$0xff]
        %v1157 = vld [vmem:[%s13 + $0x8] sm:$0xff]
        %v1158 = vld [vmem:[%s13 + $0x10] sm:$0xff]
        %1160 = vset.pattern.permute.xlu0 0
        %1161 = vperm.xlu0 %1160, %v1156
        %v1162 = vpop.permute.xlu0 %1161
        %1165 = vset.pattern.permute.xlu0 0
        %1166 = vperm.xlu0 %1165, %v1157
        %v1167 = vpop.permute.xlu0 %1166
        %1170 = vset.pattern.permute.xlu0 0
        %1171 = vperm.xlu0 %1170, %v1158
        %v1172 = vpop.permute.xlu0 %1171
        %v1175 = vsel %vm723, %v1153, 0
        %v1178 = vsel %vm723, %v1154, 0
        %v1181 = vsel %vm723, %v1155, 0
        %1183 = vmatprep.subr.mxu0 0.0
        %1184 = vmatpush1.msra.mxu0 0.0
        %1185 = vmatprep.subr.mxu0 0.0
        %1186 = vmatpush1.msra.mxu0 0.0
        %1187 = vmatprep.subr.mxu0 0.0
        %1188 = vmatpush1.msra.mxu0 0.0
        %1189 = vmatprep.subr.mxu0 0.0
        %1190 = vmatpush1.msra.mxu0 0.0
        %1191 = vmatprep.subr.mxu0 0.0
        %1192 = vmatpush1.msra.mxu0 0.0
        %1193 = vmatprep.subr.mxu0 0.0
        %1194 = vmatpush1.msra.mxu0 0.0
        %1195 = vmatprep.subr.mxu0 0.0
        %1196 = vmatpush1.msra.mxu0 0.0
        %1197 = vmatprep.subr.mxu0 0.0
        %1198 = vmatpush1.msra.mxu0 0.0
        %1199 = vmatprep.subr.mxu0 0.0
        %1200 = vmatpush1.msra.mxu0 0.0
        %1201 = vmatprep.subr.mxu0 0.0
        %1202 = vmatpush1.msra.mxu0 0.0
        %1203 = vmatprep.subr.mxu0 0.0
        %1204 = vmatpush1.msra.mxu0 %v1134
        %1205 = vmatprep.subr.mxu0 0.0
        %1206 = vmatpush1.msra.mxu0 %v1133
        %1207 = vmatprep.subr.mxu0 0.0
        %1208 = vmatpush1.msra.mxu0 %v1152
        %1209 = vmatprep.subr.mxu0 0.0
        %1210 = vmatpush1.msra.mxu0 %v1151
        %1211 = vmatprep.subr.mxu0 0.0
        %1212 = vmatpush1.msra.mxu0 %v1146
        %1213 = vmatprep.subr.mxu0 0.0
        %1214 = vmatpush1.msra.mxu0 %v1145
        %1215 = vmatprep.subr.mxu0 0.0
        %1216 = vmatpush2.msra.mxu0 0.0
        %1217 = vmatprep.subr.mxu0 0.0
        %1218 = vmatpush2.msra.mxu0 0.0
        %1219 = vmatprep.subr.mxu0 0.0
        %1220 = vmatpush2.msra.mxu0 0.0
        %1221 = vmatprep.subr.mxu0 0.0
        %1222 = vmatpush2.msra.mxu0 0.0
        %1223 = vmatprep.subr.mxu0 0.0
        %1224 = vmatpush2.msra.mxu0 0.0
        %1225 = vmatprep.subr.mxu0 0.0
        %1226 = vmatpush2.msra.mxu0 0.0
        %1227 = vmatprep.subr.mxu0 0.0
        %1228 = vmatpush2.msra.mxu0 0.0
        %1229 = vmatprep.subr.mxu0 0.0
        %1230 = vmatpush2.msra.mxu0 0.0
        %1231 = vmatprep.subr.mxu0 0.0
        %1232 = vmatpush2.msra.mxu0 0.0
        %1233 = vmatprep.subr.mxu0 0.0
        %1234 = vmatpush2.msra.mxu0 0.0
        %1235 = vmatprep.subr.mxu0 0.0
        %1236 = vmatpush2.msra.mxu0 0.0
        %1237 = vmatprep.subr.mxu0 0.0
        %1238 = vmatpush2.msra.mxu0 0.0
        %1239 = vmatprep.subr.mxu0 0.0
        %1240 = vmatpush2.msra.mxu0 0.0
        %1241 = vmatprep.subr.mxu0 0.0
        %1242 = vmatpush2.msra.mxu0 0.0
        %1243 = vmatprep.subr.mxu0 0.0
        %1244 = vmatpush2.msra.mxu0 0.0
        %1245 = vmatprep.subr.mxu0 0.0
        %1246 = vmatpush2.msra.mxu0 0.0
        %1247 = vmatprep.mubr.f32.mxu0 0.0
        %1248 = vmatmul.mubr.f32.gmra.mxu0 %v1175
        %v1249 = vpop.f32.mrf.mxu0
        %v1250 = vadd.f32 %v1162, %v1249
        %v1251 = vpop.f32.mrf.mxu0
        %1252 = vmatprep.mubr.f32.mxu0 0.0
        %1253 = vmatmul.mubr.f32.gmra.mxu0 %v1178
        %v1254 = vpop.f32.mrf.mxu0
        %v1255 = vadd.f32 %v1167, %v1254
        %v1256 = vpop.f32.mrf.mxu0
        %1257 = vmatprep.mubr.f32.mxu0 0.0
        %1258 = vmatmul.mubr.f32.gmra.mxu0 %v1181
        %v1259 = vpop.f32.mrf.mxu0
        %v1260 = vadd.f32 %v1172, %v1259
        %v1261 = vpop.f32.mrf.mxu0
        %1262 = vdwg.mxu0
        %v1263 = vmax.f32 %v1250, 0.0
        %v1264 = vmax.f32 %v1255, 0.0
        %v1265 = vmax.f32 %v1260, 0.0
        %1266 = vrot.lane.b32.xlu0 %v1263, 8
        %v1267 = vpop.permute.xlu0 %1266
        %1268 = vrot.lane.b32.xlu0 %v1264, 8
        %v1269 = vpop.permute.xlu0 %1268
        %1270 = vrot.lane.b32.xlu0 %v1265, 8
        %v1271 = vpop.permute.xlu0 %1270
        %v1272 = vmul.f32 %v1267, %v1143
        %v1273 = vmul.f32 %v1269, %v1143
        %v1274 = vmul.f32 %v1271, %v1143
        %1275 = vrot.lane.b32.xlu0 %v1263, 4
        %v1276 = vpop.permute.xlu0 %1275
        %1277 = vrot.lane.b32.xlu0 %v1264, 4
        %v1278 = vpop.permute.xlu0 %1277
        %1279 = vrot.lane.b32.xlu0 %v1265, 4
        %v1280 = vpop.permute.xlu0 %1279
        %v1281 = vmul.f32 %v1276, %v915
        %v1282 = vmul.f32 %v1278, %v915
        %v1283 = vmul.f32 %v1280, %v915
        %v1284 = vld [vmem:[%s14] sm:$0xff]
        %v1285 = vld [vmem:[%s14 + $0x8] sm:$0xff]
        %v1286 = vld [vmem:[%s14 + $0x10] sm:$0xff]
        %v1287 = vld [vmem:[%s15] sm:$0xff]
        %v1288 = vld [vmem:[%s15 + $0x8] sm:$0xff]
        %v1289 = vld [vmem:[%s15 + $0x10] sm:$0xff]
        %1291 = vset.pattern.permute.xlu0 0
        %1292 = vperm.xlu0 %1291, %v1287
        %v1293 = vpop.permute.xlu0 %1292
        %1296 = vset.pattern.permute.xlu0 0
        %1297 = vperm.xlu0 %1296, %v1288
        %v1298 = vpop.permute.xlu0 %1297
        %1301 = vset.pattern.permute.xlu0 0
        %1302 = vperm.xlu0 %1301, %v1289
        %v1303 = vpop.permute.xlu0 %1302
        %vm1305 = vcmask 588800
        %v1307 = vsel %vm1305, %v1284, 0
        %v1310 = vsel %vm1305, %v1285, 0
        %v1313 = vsel %vm1305, %v1286, 0
        %1315 = vmatprep.subr.mxu0 0.0
        %1316 = vmatpush1.msra.mxu0 0.0
        %1317 = vmatprep.subr.mxu0 0.0
        %1318 = vmatpush1.msra.mxu0 0.0
        %1319 = vmatprep.subr.mxu0 0.0
        %1320 = vmatpush1.msra.mxu0 0.0
        %1321 = vmatprep.subr.mxu0 0.0
        %1322 = vmatpush1.msra.mxu0 0.0
        %1323 = vmatprep.subr.mxu0 0.0
        %1324 = vmatpush1.msra.mxu0 0.0
        %1325 = vmatprep.subr.mxu0 0.0
        %1326 = vmatpush1.msra.mxu0 0.0
        %1327 = vmatprep.subr.mxu0 0.0
        %1328 = vmatpush1.msra.mxu0 0.0
        %1329 = vmatprep.subr.mxu0 0.0
        %1330 = vmatpush1.msra.mxu0 %v1265
        %1331 = vmatprep.subr.mxu0 0.0
        %1332 = vmatpush1.msra.mxu0 %v1264
        %1333 = vmatprep.subr.mxu0 0.0
        %1334 = vmatpush1.msra.mxu0 %v1263
        %1335 = vmatprep.subr.mxu0 0.0
        %1336 = vmatpush1.msra.mxu0 %v1283
        %1337 = vmatprep.subr.mxu0 0.0
        %1338 = vmatpush1.msra.mxu0 %v1282
        %1339 = vmatprep.subr.mxu0 0.0
        %1340 = vmatpush1.msra.mxu0 %v1281
        %1341 = vmatprep.subr.mxu0 0.0
        %1342 = vmatpush1.msra.mxu0 %v1274
        %1343 = vmatprep.subr.mxu0 0.0
        %1344 = vmatpush1.msra.mxu0 %v1273
        %1345 = vmatprep.subr.mxu0 0.0
        %1346 = vmatpush1.msra.mxu0 %v1272
        %1347 = vmatprep.subr.mxu0 0.0
        %1348 = vmatpush2.msra.mxu0 0.0
        %1349 = vmatprep.subr.mxu0 0.0
        %1350 = vmatpush2.msra.mxu0 0.0
        %1351 = vmatprep.subr.mxu0 0.0
        %1352 = vmatpush2.msra.mxu0 0.0
        %1353 = vmatprep.subr.mxu0 0.0
        %1354 = vmatpush2.msra.mxu0 0.0
        %1355 = vmatprep.subr.mxu0 0.0
        %1356 = vmatpush2.msra.mxu0 0.0
        %1357 = vmatprep.subr.mxu0 0.0
        %1358 = vmatpush2.msra.mxu0 0.0
        %1359 = vmatprep.subr.mxu0 0.0
        %1360 = vmatpush2.msra.mxu0 0.0
        %1361 = vmatprep.subr.mxu0 0.0
        %1362 = vmatpush2.msra.mxu0 0.0
        %1363 = vmatprep.subr.mxu0 0.0
        %1364 = vmatpush2.msra.mxu0 0.0
        %1365 = vmatprep.subr.mxu0 0.0
        %1366 = vmatpush2.msra.mxu0 0.0
        %1367 = vmatprep.subr.mxu0 0.0
        %1368 = vmatpush2.msra.mxu0 0.0
        %1369 = vmatprep.subr.mxu0 0.0
        %1370 = vmatpush2.msra.mxu0 0.0
        %1371 = vmatprep.subr.mxu0 0.0
        %1372 = vmatpush2.msra.mxu0 0.0
        %1373 = vmatprep.subr.mxu0 0.0
        %1374 = vmatpush2.msra.mxu0 0.0
        %1375 = vmatprep.subr.mxu0 0.0
        %1376 = vmatpush2.msra.mxu0 0.0
        %1377 = vmatprep.subr.mxu0 0.0
        %1378 = vmatpush2.msra.mxu0 0.0
        %1379 = vmatprep.mubr.f32.mxu0 0.0
        %1380 = vmatmul.mubr.f32.gmra.mxu0 %v1307
        %v1381 = vpop.f32.mrf.mxu0
        %v1382 = vadd.f32 %v1293, %v1381
        %v1383 = vpop.f32.mrf.mxu0
        %1384 = vmatprep.mubr.f32.mxu0 0.0
        %1385 = vmatmul.mubr.f32.gmra.mxu0 %v1310
        %v1386 = vpop.f32.mrf.mxu0
        %v1387 = vadd.f32 %v1298, %v1386
        %v1388 = vpop.f32.mrf.mxu0
        %1389 = vmatprep.mubr.f32.mxu0 0.0
        %1390 = vmatmul.mubr.f32.gmra.mxu0 %v1313
        %v1391 = vpop.f32.mrf.mxu0
        %v1392 = vadd.f32 %v1303, %v1391
        %v1393 = vpop.f32.mrf.mxu0
        %1394 = vdwg.mxu0
        %v1395 = vmax.f32 %v1382, 0.0
        %v1396 = vmax.f32 %v1387, 0.0
        %v1397 = vmax.f32 %v1392, 0.0
        %v1398 = vld [vmem:[%s16] sm:$0xff]
        %v1399 = vld [vmem:[%s16 + $0x8] sm:$0xff]
        %v1400 = vld [vmem:[%s16 + $0x10] sm:$0xff]
        %v1401 = vld [vmem:[%s17] sm:$0xff]
        %v1402 = vld [vmem:[%s17 + $0x8] sm:$0xff]
        %v1403 = vld [vmem:[%s17 + $0x10] sm:$0xff]
        %1405 = vset.pattern.permute.xlu0 0
        %1406 = vperm.xlu0 %1405, %v1401
        %v1407 = vpop.permute.xlu0 %1406
        %1410 = vset.pattern.permute.xlu0 0
        %1411 = vperm.xlu0 %1410, %v1402
        %v1412 = vpop.permute.xlu0 %1411
        %1415 = vset.pattern.permute.xlu0 0
        %1416 = vperm.xlu0 %1415, %v1403
        %v1417 = vpop.permute.xlu0 %1416
        %vm1419 = vcmask 130048
        %v1421 = vsel %vm1419, %v1398, 0
        %v1424 = vsel %vm1419, %v1399, 0
        %v1427 = vsel %vm1419, %v1400, 0
        %1429 = vmatprep.subr.mxu0 0.0
        %1430 = vmatpush1.msra.mxu0 0.0
        %1431 = vmatprep.subr.mxu0 0.0
        %1432 = vmatpush1.msra.mxu0 0.0
        %1433 = vmatprep.subr.mxu0 0.0
        %1434 = vmatpush1.msra.mxu0 0.0
        %1435 = vmatprep.subr.mxu0 0.0
        %1436 = vmatpush1.msra.mxu0 0.0
        %1437 = vmatprep.subr.mxu0 0.0
        %1438 = vmatpush1.msra.mxu0 0.0
        %1439 = vmatprep.subr.mxu0 0.0
        %1440 = vmatpush1.msra.mxu0 0.0
        %1441 = vmatprep.subr.mxu0 0.0
        %1442 = vmatpush1.msra.mxu0 0.0
        %1443 = vmatprep.subr.mxu0 0.0
        %1444 = vmatpush1.msra.mxu0 0.0
        %1445 = vmatprep.subr.mxu0 0.0
        %1446 = vmatpush1.msra.mxu0 0.0
        %1447 = vmatprep.subr.mxu0 0.0
        %1448 = vmatpush1.msra.mxu0 0.0
        %1449 = vmatprep.subr.mxu0 0.0
        %1450 = vmatpush1.msra.mxu0 0.0
        %1451 = vmatprep.subr.mxu0 0.0
        %1452 = vmatpush1.msra.mxu0 0.0
        %1453 = vmatprep.subr.mxu0 0.0
        %1454 = vmatpush1.msra.mxu0 0.0
        %1455 = vmatprep.subr.mxu0 0.0
        %1456 = vmatpush1.msra.mxu0 0.0
        %1457 = vmatprep.subr.mxu0 0.0
        %1458 = vmatpush1.msra.mxu0 %v1134
        %1459 = vmatprep.subr.mxu0 0.0
        %1460 = vmatpush1.msra.mxu0 %v1133
        %1461 = vmatprep.subr.mxu0 0.0
        %1462 = vmatpush2.msra.mxu0 0.0
        %1463 = vmatprep.subr.mxu0 0.0
        %1464 = vmatpush2.msra.mxu0 0.0
        %1465 = vmatprep.subr.mxu0 0.0
        %1466 = vmatpush2.msra.mxu0 0.0
        %1467 = vmatprep.subr.mxu0 0.0
        %1468 = vmatpush2.msra.mxu0 0.0
        %1469 = vmatprep.subr.mxu0 0.0
        %1470 = vmatpush2.msra.mxu0 0.0
        %1471 = vmatprep.subr.mxu0 0.0
        %1472 = vmatpush2.msra.mxu0 0.0
        %1473 = vmatprep.subr.mxu0 0.0
        %1474 = vmatpush2.msra.mxu0 0.0
        %1475 = vmatprep.subr.mxu0 0.0
        %1476 = vmatpush2.msra.mxu0 0.0
        %1477 = vmatprep.subr.mxu0 0.0
        %1478 = vmatpush2.msra.mxu0 0.0
        %1479 = vmatprep.subr.mxu0 0.0
        %1480 = vmatpush2.msra.mxu0 0.0
        %1481 = vmatprep.subr.mxu0 0.0
        %1482 = vmatpush2.msra.mxu0 0.0
        %1483 = vmatprep.subr.mxu0 0.0
        %1484 = vmatpush2.msra.mxu0 0.0
        %1485 = vmatprep.subr.mxu0 0.0
        %1486 = vmatpush2.msra.mxu0 0.0
        %1487 = vmatprep.subr.mxu0 0.0
        %1488 = vmatpush2.msra.mxu0 0.0
        %1489 = vmatprep.subr.mxu0 0.0
        %1490 = vmatpush2.msra.mxu0 0.0
        %1491 = vmatprep.subr.mxu0 0.0
        %1492 = vmatpush2.msra.mxu0 0.0
        %1493 = vmatprep.mubr.f32.mxu0 0.0
        %1494 = vmatmul.mubr.f32.gmra.mxu0 %v1421
        %v1495 = vpop.f32.mrf.mxu0
        %v1496 = vadd.f32 %v1407, %v1495
        %v1497 = vpop.f32.mrf.mxu0
        %1498 = vmatprep.mubr.f32.mxu0 0.0
        %1499 = vmatmul.mubr.f32.gmra.mxu0 %v1424
        %v1500 = vpop.f32.mrf.mxu0
        %v1501 = vadd.f32 %v1412, %v1500
        %v1502 = vpop.f32.mrf.mxu0
        %1503 = vmatprep.mubr.f32.mxu0 0.0
        %1504 = vmatmul.mubr.f32.gmra.mxu0 %v1427
        %v1505 = vpop.f32.mrf.mxu0
        %v1506 = vadd.f32 %v1417, %v1505
        %v1507 = vpop.f32.mrf.mxu0
        %1508 = vdwg.mxu0
        %v1509 = vadd.f32 %v1395, %v1496
        %v1510 = vadd.f32 %v1396, %v1501
        %v1511 = vadd.f32 %v1397, %v1506
        %v1512 = vmax.f32 %v1509, 0.0
        %v1513 = vmax.f32 %v1510, 0.0
        %v1514 = vmax.f32 %v1511, 0.0
        %1515 = vst [vmem:[%s566] sm:$0xff] %v1512
        %1516 = vst [vmem:[%s566 + $0x8] sm:$0xff] %v1513
        %1517 = vst [vmem:[%s566 + $0x10] sm:$0xff] %v1514
        %s1518 = sand.u32 %s423, 1
        %s1519 = scalar_lea.sflag [#allocation3], %s1518
        %s1520 = sand.u32 %s423, 1
        %s1521 = smul.addr %s1520, 24
        %s1522 = scalar_lea.vmem [#allocation2], %s1521
        // Predicated region
        $region93: #{tpu_custom_call.1} parent=91 // pred_check
          %p1523 = pneg %p433
        $region94: #{tpu_custom_call.1} parent=91 // pred_check_branch
          %1525 = sbr.rel (%p1523) target = $region96
        $region95: #{tpu_custom_call.1} parent=91 // pred_region
          %s1527 = ssub.s32 384, 384
          %1528 = vsyncadd %s1519, %s1527
          %s1529 = smul.addr %s32, 128
          %s1530 = scalar_lea.hbm %s18, %s1529
          %s1531 = sshll.u32 %s1522, 4
          %s1532 = int_to_ptr.vmem [resolvable:$true] %s1531
          %1537 = dma.vmem_to_hbm [thread:$0]  %s1532, 384, %s1530, %s1519, 128, 256, 8
        $region96: #{tpu_custom_call.1} parent=91 // pred_fallthru
          _
      $region92: #{tpu_custom_call.1} parent=5 // pred_fallthru
        _
      %p1538 = scmp.le.s32.totalorder 2, %s27
      // Predicated region
      $region97: #{tpu_custom_call.1} parent=5 // pred_check
        %p1539 = pneg %p1538
      $region98: #{tpu_custom_call.1} parent=5 // pred_check_branch
        %1541 = sbr.rel (%p1539) target = $region100
      $region99: #{tpu_custom_call.1} parent=5 // pred_region
        %s1542 = ssub.s32 %s27, 2
        // Predicated region
        $region101: #{tpu_custom_call.1} parent=99 // pred_check
          %p1543 = pneg %p439
        $region102: #{tpu_custom_call.1} parent=99 // pred_check_branch
          %1545 = sbr.rel (%p1543) target = $region104
        $region103: #{tpu_custom_call.1} parent=99 // pred_region
          %s1546 = sand.u32 %s424, 1
          %s1547 = scalar_lea.sflag [#allocation3], %s1546
          %s1548 = sand.u32 %s424, 1
          %s1549 = smul.addr %s1548, 24
          %s1550 = scalar_lea.vmem [#allocation2], %s1549
          %1551 = dma.done %s1547, 384
        $region104: #{tpu_custom_call.1} parent=99 // pred_fallthru
          _
      $region100: #{tpu_custom_call.1} parent=5 // pred_fallthru
        _
    $region6: #{tpu_custom_call.1} parent=1 // loop_footer
      %s31 = sadd.s32 1, %s27
    $region7: #{tpu_custom_call.1} parent=1 // loop_footer_branch
      %26 = sbr.rel target = $region3
    $region8: #{tpu_custom_call.1} parent=1 // loop_exit
      _
    %1552 = vsyncpa [#allocation3], 1
    %s1553 = scalar_lea.sflag [#allocation3], 1
    %1554 = vsyncpa %s1553, 1

</llo_original>
